<compile_context>
chip_gen: v5e
topology: v5e:2x2
jax: 0.10.0
libtpu: 0.0.40
codegen_flags: <defaults>
</compile_context>

<pallas_src>
import jax
import jax.numpy as jnp
from jax.experimental import pallas as pl
from jax.experimental.pallas import tpu as pltpu

F32 = jnp.float32
BF16 = jnp.bfloat16
HP = jax.lax.Precision.HIGHEST  # reference only


def _round_up(v, m):
    return (v + m - 1) // m * m


# ----------------------------------------------------------------------------- kernel
def _make_kernel(H, W, Gmp):
    HW = H * W

    def kernel(x_ref, ws_ref, ph_ref, pw_ref, bh_ref, bw_ref, cm_ref, k3_ref,
               sb_ref, wf_ref, fb_ref, o_ref):
        def mm(a, b):
            return jnp.dot(a, b, preferred_element_type=F32)

        def silu(v):
            return v * jax.nn.sigmoid(v)

        def hswish(v):                                    # x * relu6(x+3) / 6
            return v * jnp.clip(v + 3.0, 0.0, 6.0) * (1.0 / 6.0)

        # packed per-channel columns, each (Gmp, 1), f32
        g_bi = sb_ref[:, 0:1]
        bn1_bi = sb_ref[:, 1:2]
        c3_bi = sb_ref[:, 2:3]
        gn_sc = sb_ref[:, 3:4]
        gn_bi = sb_ref[:, 4:5]
        nmask = sb_ref[:, 5:6]                            # 0 real chan, -1e9 pad

        x = x_ref[...]                                    # (C1, HW) bf16

        # ---- fused 1x1 convs: [g_sc*wg ; bn1_sc*wc1] @ x (bf16 MXU, f32 acc) ------
        t = mm(ws_ref[...], x)                            # (2*Gmp, HW) f32
        G = silu(t[:Gmp] + g_bi)                          # G_conv: conv+BN+SiLU
        c1x = t[Gmp:]                                     # bn1_sc * conv1(x)

        # ---- directional pooling branch (batch-shared, zero-free constants) -------
        c1x_bf = c1x.astype(BF16)
        a_h = jax.nn.sigmoid(hswish(mm(c1x_bf, ph_ref[...]) + bn1_bi))   # (Gmp, H)
        a_w = jax.nn.sigmoid(hswish(mm(c1x_bf, pw_ref[...]) + bn1_bi))   # (Gmp, W)
        a_h_full = mm(a_h.astype(BF16), bh_ref[...])      # (Gmp, HW)
        a_w_full = mm(a_w.astype(BF16), bw_ref[...])      # (Gmp, HW)
        re_weight = G * a_w_full * a_h_full

        # ---- 3x3 SAME conv on G: 9 matmul-accumulates, no plane concat ------------
        acc3 = mm(k3_ref[4], G.astype(BF16))              # center tap (mask == 1)
        for ti in range(9):
            if ti == 4:
                continue
            dy, dx = ti // 3 - 1, ti % 3 - 1
            d = dy * W + dx
            rolled = pltpu.roll(G, (-d) % HW, 1)          # plane[pos] = G[pos + d]
            acc3 = acc3 + mm(k3_ref[ti], rolled.astype(BF16)) * cm_ref[ti]
        C3 = silu(acc3 + c3_bi)                           # Conv_3: conv+BN+SiLU

        # ---- per-batch GAP + channel softmax (padded channels masked out) ---------
        def chan_softmax(logits):                         # (Gmp, 1)
            l = logits + nmask
            mx = jnp.max(l, axis=0, keepdims=True)
            e = jnp.exp(l - mx)
            return e / jnp.sum(e, axis=0, keepdims=True)

        s1 = chan_softmax(jnp.mean(C3, axis=1, keepdims=True))              # gap(Conv_3)
        s2 = chan_softmax(gn_sc * jnp.mean(G, axis=1, keepdims=True) + gn_bi)  # gap(GN(G))

        gn_rw = gn_sc * re_weight + gn_bi
        att = jax.nn.sigmoid(C3 * s2 + gn_rw * s1)

        # ---- final 1x1 conv (+folded BN) + SiLU ------------------------------------
        o_ref[...] = silu(mm(wf_ref[...], (att * G).astype(BF16)) + fb_ref[...])

    return kernel


# ----------------------------------------------------------------------------- wrapper
def _ema_att_forward(x_nchw, p):
    N, C1, H, W = x_nchw.shape
    HW = H * W
    Gm = p['wg'].shape[0]
    C2 = p['wf'].shape[0]
    Gmp = _round_up(Gm, 8)
    C2p = _round_up(C2, 8)

    # layout: NCHW -> (C1, N*HW); channels on sublanes, spatial on lanes, bf16 DMA
    x2d = jnp.transpose(x_nchw, (1, 0, 2, 3)).reshape(C1, N * HW).astype(BF16)

    # batch-shared geometry constants (const-folded under jit)
    col = jnp.arange(HW, dtype=jnp.int32)
    yy = col // W
    xx = col % W
    Ph = ((yy[:, None] == jnp.arange(H)[None, :]).astype(F32) / W).astype(BF16)   # (HW, H)
    Pw = ((xx[:, None] == jnp.arange(W)[None, :]).astype(F32) / H).astype(BF16)   # (HW, W)
    Bh = (jnp.arange(H)[:, None] == yy[None, :]).astype(BF16)                     # (H, HW)
    Bw = (jnp.arange(W)[:, None] == xx[None, :]).astype(BF16)                     # (W, HW)

    # 3x3-conv boundary masks (applied after the per-tap matmul; per-position only)
    masks = []
    for ti in range(9):
        dy, dx = ti // 3 - 1, ti % 3 - 1
        masks.append(((yy + dy >= 0) & (yy + dy < H) &
                      (xx + dx >= 0) & (xx + dx < W)).astype(F32))
    cmask = jnp.stack(masks, axis=0).reshape(9, 1, HW)

    # fold BN scales into weights, pad channel dims to sublane multiples, bf16 weights
    def pad_rows(a, n):
        return jnp.pad(a, ((0, n - a.shape[0]),) + ((0, 0),) * (a.ndim - 1))

    def pad_vec(v, n):
        return jnp.pad(v, (0, n - v.shape[0]))

    wg_f = p['g_sc'][:, None] * p['wg']
    wc1_f = p['bn1_sc'][:, None] * p['wc1']
    ws = jnp.concatenate([pad_rows(wg_f, Gmp), pad_rows(wc1_f, Gmp)],
                         axis=0).astype(BF16)                                     # (2*Gmp, C1)

    bn1_bi_eff = p['bn1_sc'] * p['b1'] + p['bn1_bi']

    k3_f = p['c3_sc'][:, None, None, None] * p['k3']                  # (Gm, Gm, 3, 3) OIHW
    k3_p = jnp.pad(k3_f, ((0, Gmp - Gm), (0, Gmp - Gm), (0, 0), (0, 0)))
    k3_taps = jnp.transpose(k3_p, (2, 3, 0, 1)).reshape(9, Gmp, Gmp).astype(BF16)

    nmask = jnp.where(jnp.arange(Gmp) < Gm, 0.0, -1e9).astype(F32)
    sb = jnp.stack([pad_vec(p['g_bi'], Gmp), pad_vec(bn1_bi_eff, Gmp),
                    pad_vec(p['c3_bi'], Gmp), pad_vec(p['gn_sc'], Gmp),
                    pad_vec(p['gn_bi'], Gmp), nmask], axis=1).astype(F32)         # (Gmp, 6)

    wf_f = p['f_sc'][:, None] * p['wf']
    wf_p = jnp.pad(wf_f, ((0, C2p - C2), (0, Gmp - Gm))).astype(BF16)
    fb = pad_vec(p['f_bi'], C2p).reshape(C2p, 1).astype(F32)

    consts = [ws, Ph, Pw, Bh, Bw, cmask, k3_taps, sb, wf_p, fb]

    def whole(arr):
        nd = arr.ndim
        return pl.BlockSpec(arr.shape, lambda n, _nd=nd: (0,) * _nd)

    matmul_flops = 2 * HW * (2 * Gmp * C1 + 2 * Gmp * (H + W)
                             + 9 * Gmp * Gmp + C2p * Gmp)
    flops = N * (matmul_flops + 60 * Gmp * HW)
    bytes_accessed = (int(x2d.size) * x2d.dtype.itemsize
                      + sum(int(a.size) * a.dtype.itemsize for a in consts)
                      + C2p * N * HW * 4)

    out2d = pl.pallas_call(
        _make_kernel(H, W, Gmp),
        out_shape=jax.ShapeDtypeStruct((C2p, N * HW), F32),
        grid=(N,),
        in_specs=[pl.BlockSpec((C1, HW), lambda n: (0, n))] + [whole(a) for a in consts],
        out_specs=pl.BlockSpec((C2p, HW), lambda n: (0, n)),
        compiler_params=pltpu.CompilerParams(
            dimension_semantics=("parallel",),
            vmem_limit_bytes=32 * 1024 * 1024),
        cost_estimate=pl.CostEstimate(flops=int(flops),
                                      transcendentals=int(6 * N * Gmp * HW),
                                      bytes_accessed=int(bytes_accessed)),
    )(x2d, *consts)

    return jnp.transpose(out2d.reshape(C2p, N, H, W), (1, 0, 2, 3))[:, :C2]


ema_att_pallas = jax.jit(_ema_att_forward)


# ----------------------------------------------------------------------------- reference
def ema_att_reference(x, p):
    def silu(v):
        return v * jax.nn.sigmoid(v)

    def hswish(v):
        return v * jnp.clip(v + 3.0, 0.0, 6.0) / 6.0

    def aff(v, sc, bi):
        return sc[None, :, None, None] * v + bi[None, :, None, None]

    def conv1x1(v, w):
        return jnp.einsum('oi,nihw->nohw', w, v, precision=HP)

    N, C1, H, W = x.shape
    G = silu(aff(conv1x1(x, p['wg']), p['g_sc'], p['g_bi']))

    x_h = jnp.mean(x, axis=3, keepdims=True)                              # (N,C1,H,1)
    x_w = jnp.mean(x, axis=2, keepdims=True).transpose(0, 1, 3, 2)        # (N,C1,W,1)
    y = jnp.concatenate([x_h, x_w], axis=2)
    y = conv1x1(y, p['wc1']) + p['b1'][None, :, None, None]
    y = hswish(aff(y, p['bn1_sc'], p['bn1_bi']))
    a_h = jax.nn.sigmoid(y[:, :, :H, :])
    a_w = jax.nn.sigmoid(y[:, :, H:, :].transpose(0, 1, 3, 2))
    re_weight = G * a_w * a_h

    c3 = jax.lax.conv_general_dilated(
        G, p['k3'], window_strides=(1, 1), padding='SAME',
        dimension_numbers=('NCHW', 'OIHW', 'NCHW'), precision=HP)
    C3 = silu(aff(c3, p['c3_sc'], p['c3_bi']))

    gn_rw = aff(re_weight, p['gn_sc'], p['gn_bi'])
    gn_G = aff(G, p['gn_sc'], p['gn_bi'])

    def gap(v):
        return jnp.mean(v, axis=(2, 3), keepdims=True)

    k2_out = gn_rw * jax.nn.softmax(gap(C3), axis=1)
    k1_out = C3 * jax.nn.softmax(gap(gn_G), axis=1)
    att = jax.nn.sigmoid(k1_out + k2_out)
    return silu(aff(conv1x1(att * G, p['wf']), p['f_sc'], p['f_bi']))


# ----------------------------------------------------------------------------- main
if __name__ == "__main__":
    N, C1, H, W = 2, 8, 16, 16
    g = 2
    Gm = C1 // g
    C2 = 8

    key = jax.random.PRNGKey(0)
    keys = jax.random.split(key, 12)

    def fold_bn(k, c):
        k1, k2, k3, k4 = jax.random.split(k, 4)
        gamma = 1.0 + 0.1 * jax.random.normal(k1, (c,), F32)
        beta = 0.1 * jax.random.normal(k2, (c,), F32)
        rmean = 0.1 * jax.random.normal(k3, (c,), F32)
        rvar = 0.5 + 0.5 * jax.random.uniform(k4, (c,), F32)
        scale = gamma / jnp.sqrt(rvar + 1e-5)
        return scale, beta - rmean * scale

    g_sc, g_bi = fold_bn(keys[0], Gm)
    bn1_sc, bn1_bi = fold_bn(keys[1], Gm)
    c3_sc, c3_bi = fold_bn(keys[2], Gm)
    gn_sc, gn_bi = fold_bn(keys[3], Gm)
    f_sc, f_bi = fold_bn(keys[4], C2)

    params = dict(
        wg=0.3 * jax.random.normal(keys[5], (Gm, C1), F32),
        wc1=0.3 * jax.random.normal(keys[6], (Gm, C1), F32),
        b1=0.1 * jax.random.normal(keys[7], (Gm,), F32),
        k3=0.2 * jax.random.normal(keys[8], (Gm, Gm, 3, 3), F32),
        wf=0.3 * jax.random.normal(keys[9], (C2, Gm), F32),
        g_sc=g_sc, g_bi=g_bi, bn1_sc=bn1_sc, bn1_bi=bn1_bi,
        c3_sc=c3_sc, c3_bi=c3_bi, gn_sc=gn_sc, gn_bi=gn_bi,
        f_sc=f_sc, f_bi=f_bi,
    )

    x = 0.5 * jax.random.normal(keys[10], (N, C1, H, W), F32)

    out = jax.block_until_ready(ema_att_pallas(x, params))
    ref = jax.block_until_ready(ema_att_reference(x, params))

    assert out.shape == (N, C2, H, W)
    max_err = float(jnp.max(jnp.abs(out - ref)))
    if not (bool(jnp.all(jnp.isfinite(out))) and max_err < 2e-2):
        raise AssertionError(f"Pallas kernel mismatch vs reference: max abs err={max_err}")
    print("KERNEL_OK")
</pallas_src>

<mosaic_0001>
module attributes {stable_mosaic.version = 11 : i64} {
  func.func @kernel(%arg0: i32, %arg1: memref<8x256xbf16, #tpu.memory_space<vmem>>, %arg2: memref<16x8xbf16, #tpu.memory_space<vmem>>, %arg3: memref<256x16xbf16, #tpu.memory_space<vmem>>, %arg4: memref<256x16xbf16, #tpu.memory_space<vmem>>, %arg5: memref<16x256xbf16, #tpu.memory_space<vmem>>, %arg6: memref<16x256xbf16, #tpu.memory_space<vmem>>, %arg7: memref<9x1x256xf32, #tpu.memory_space<vmem>>, %arg8: memref<9x8x8xbf16, #tpu.memory_space<vmem>>, %arg9: memref<8x6xf32, #tpu.memory_space<vmem>>, %arg10: memref<8x8xbf16, #tpu.memory_space<vmem>>, %arg11: memref<8x1xf32, #tpu.memory_space<vmem>>, %arg12: memref<8x256xf32, #tpu.memory_space<vmem>>) attributes {dimension_semantics = [#tpu.dimension_semantics<parallel>], iteration_bounds = array<i64: 2>, scalar_prefetch = 0 : i64, scratch_operands = 0 : i64, tpu.core_type = #tpu.core_type<tc>, window_params = [{transform_indices = @transform_0, window_bounds = array<i64: 8, 256>}, {pipeline_mode = #tpu.pipeline_mode<synchronous>, transform_indices = @transform_1, window_bounds = array<i64: 16, 8>}, {pipeline_mode = #tpu.pipeline_mode<synchronous>, transform_indices = @transform_2, window_bounds = array<i64: 256, 16>}, {pipeline_mode = #tpu.pipeline_mode<synchronous>, transform_indices = @transform_3, window_bounds = array<i64: 256, 16>}, {pipeline_mode = #tpu.pipeline_mode<synchronous>, transform_indices = @transform_4, window_bounds = array<i64: 16, 256>}, {pipeline_mode = #tpu.pipeline_mode<synchronous>, transform_indices = @transform_5, window_bounds = array<i64: 16, 256>}, {pipeline_mode = #tpu.pipeline_mode<synchronous>, transform_indices = @transform_6, window_bounds = array<i64: 9, 1, 256>}, {pipeline_mode = #tpu.pipeline_mode<synchronous>, transform_indices = @transform_7, window_bounds = array<i64: 9, 8, 8>}, {pipeline_mode = #tpu.pipeline_mode<synchronous>, transform_indices = @transform_8, window_bounds = array<i64: 8, 6>}, {pipeline_mode = #tpu.pipeline_mode<synchronous>, transform_indices = @transform_9, window_bounds = array<i64: 8, 8>}, {pipeline_mode = #tpu.pipeline_mode<synchronous>, transform_indices = @transform_10, window_bounds = array<i64: 8, 1>}, {transform_indices = @transform_11, window_bounds = array<i64: 8, 256>}]} {
    %c0 = arith.constant 0 : index
    %c0_0 = arith.constant 0 : index
    %0 = vector.load %arg9[%c0, %c0_0] : memref<8x6xf32, #tpu.memory_space<vmem>>, vector<8x1xf32>
    %c0_1 = arith.constant 0 : index
    %c1 = arith.constant 1 : index
    %1 = vector.load %arg9[%c0_1, %c1] : memref<8x6xf32, #tpu.memory_space<vmem>>, vector<8x1xf32>
    %c0_2 = arith.constant 0 : index
    %c2 = arith.constant 2 : index
    %2 = vector.load %arg9[%c0_2, %c2] : memref<8x6xf32, #tpu.memory_space<vmem>>, vector<8x1xf32>
    %c0_3 = arith.constant 0 : index
    %c3 = arith.constant 3 : index
    %3 = vector.load %arg9[%c0_3, %c3] : memref<8x6xf32, #tpu.memory_space<vmem>>, vector<8x1xf32>
    %c0_4 = arith.constant 0 : index
    %c4 = arith.constant 4 : index
    %4 = vector.load %arg9[%c0_4, %c4] : memref<8x6xf32, #tpu.memory_space<vmem>>, vector<8x1xf32>
    %c0_5 = arith.constant 0 : index
    %c5 = arith.constant 5 : index
    %5 = vector.load %arg9[%c0_5, %c5] : memref<8x6xf32, #tpu.memory_space<vmem>>, vector<8x1xf32>
    %c0_6 = arith.constant 0 : index
    %c0_7 = arith.constant 0 : index
    %6 = vector.load %arg1[%c0_6, %c0_7] : memref<8x256xbf16, #tpu.memory_space<vmem>>, vector<8x256xbf16>
    %c0_8 = arith.constant 0 : index
    %c0_9 = arith.constant 0 : index
    %7 = vector.load %arg2[%c0_8, %c0_9] : memref<16x8xbf16, #tpu.memory_space<vmem>>, vector<16x8xbf16>
    %cst = arith.constant dense<0.000000e+00> : vector<16x256xf32>
    %8 = tpu.matmul %7, %6, %cst {dimension_numbers = #tpu.dot_dimension_numbers<[1], [0], [0], [1], [0, 0, 1, 1], [], []>} : vector<16x8xbf16>, vector<8x256xbf16>, vector<16x256xf32> -> vector<16x256xf32>
    %9 = vector.extract_strided_slice %8 {offsets = [0, 0], sizes = [8, 256], strides = [1, 1]} : vector<16x256xf32> to vector<8x256xf32>
    %10 = vector.broadcast %0 : vector<8x1xf32> to vector<8x256xf32>
    %11 = arith.addf %9, %10 : vector<8x256xf32>
    %12 = arith.negf %11 : vector<8x256xf32>
    %13 = math.exp %12 : vector<8x256xf32>
    %cst_10 = arith.constant 1.000000e+00 : f32
    %14 = vector.broadcast %cst_10 : f32 to vector<8x256xf32>
    %15 = arith.addf %14, %13 : vector<8x256xf32>
    %16 = arith.divf %14, %15 : vector<8x256xf32>
    %17 = arith.mulf %11, %16 : vector<8x256xf32>
    %18 = vector.extract_strided_slice %8 {offsets = [8, 0], sizes = [8, 256], strides = [1, 1]} : vector<16x256xf32> to vector<8x256xf32>
    %19 = arith.truncf %18 : vector<8x256xf32> to vector<8x256xbf16>
    %c0_11 = arith.constant 0 : index
    %c0_12 = arith.constant 0 : index
    %20 = vector.load %arg3[%c0_11, %c0_12] : memref<256x16xbf16, #tpu.memory_space<vmem>>, vector<256x16xbf16>
    %cst_13 = arith.constant dense<0.000000e+00> : vector<8x16xf32>
    %21 = tpu.matmul %19, %20, %cst_13 {dimension_numbers = #tpu.dot_dimension_numbers<[1], [0], [0], [1], [0, 0, 1, 1], [], []>} : vector<8x256xbf16>, vector<256x16xbf16>, vector<8x16xf32> -> vector<8x16xf32>
    %22 = vector.broadcast %1 : vector<8x1xf32> to vector<8x16xf32>
    %23 = arith.addf %21, %22 : vector<8x16xf32>
    %cst_14 = arith.constant 3.000000e+00 : f32
    %24 = vector.broadcast %cst_14 : f32 to vector<8x16xf32>
    %25 = arith.addf %23, %24 : vector<8x16xf32>
    %cst_15 = arith.constant 0.000000e+00 : f32
    %cst_16 = arith.constant 6.000000e+00 : f32
    %26 = vector.broadcast %cst_15 : f32 to vector<8x16xf32>
    %27 = arith.maximumf %26, %25 : vector<8x16xf32>
    %28 = vector.broadcast %cst_16 : f32 to vector<8x16xf32>
    %29 = arith.minimumf %28, %27 : vector<8x16xf32>
    %30 = arith.mulf %23, %29 : vector<8x16xf32>
    %cst_17 = arith.constant 0.166666672 : f32
    %31 = vector.broadcast %cst_17 : f32 to vector<8x16xf32>
    %32 = arith.mulf %30, %31 : vector<8x16xf32>
    %33 = arith.negf %32 : vector<8x16xf32>
    %34 = math.exp %33 : vector<8x16xf32>
    %cst_18 = arith.constant 1.000000e+00 : f32
    %35 = vector.broadcast %cst_18 : f32 to vector<8x16xf32>
    %36 = arith.addf %35, %34 : vector<8x16xf32>
    %37 = arith.divf %35, %36 : vector<8x16xf32>
    %c0_19 = arith.constant 0 : index
    %c0_20 = arith.constant 0 : index
    %38 = vector.load %arg4[%c0_19, %c0_20] : memref<256x16xbf16, #tpu.memory_space<vmem>>, vector<256x16xbf16>
    %cst_21 = arith.constant dense<0.000000e+00> : vector<8x16xf32>
    %39 = tpu.matmul %19, %38, %cst_21 {dimension_numbers = #tpu.dot_dimension_numbers<[1], [0], [0], [1], [0, 0, 1, 1], [], []>} : vector<8x256xbf16>, vector<256x16xbf16>, vector<8x16xf32> -> vector<8x16xf32>
    %40 = vector.broadcast %1 : vector<8x1xf32> to vector<8x16xf32>
    %41 = arith.addf %39, %40 : vector<8x16xf32>
    %cst_22 = arith.constant 3.000000e+00 : f32
    %42 = vector.broadcast %cst_22 : f32 to vector<8x16xf32>
    %43 = arith.addf %41, %42 : vector<8x16xf32>
    %cst_23 = arith.constant 0.000000e+00 : f32
    %cst_24 = arith.constant 6.000000e+00 : f32
    %44 = vector.broadcast %cst_23 : f32 to vector<8x16xf32>
    %45 = arith.maximumf %44, %43 : vector<8x16xf32>
    %46 = vector.broadcast %cst_24 : f32 to vector<8x16xf32>
    %47 = arith.minimumf %46, %45 : vector<8x16xf32>
    %48 = arith.mulf %41, %47 : vector<8x16xf32>
    %cst_25 = arith.constant 0.166666672 : f32
    %49 = vector.broadcast %cst_25 : f32 to vector<8x16xf32>
    %50 = arith.mulf %48, %49 : vector<8x16xf32>
    %51 = arith.negf %50 : vector<8x16xf32>
    %52 = math.exp %51 : vector<8x16xf32>
    %cst_26 = arith.constant 1.000000e+00 : f32
    %53 = vector.broadcast %cst_26 : f32 to vector<8x16xf32>
    %54 = arith.addf %53, %52 : vector<8x16xf32>
    %55 = arith.divf %53, %54 : vector<8x16xf32>
    %56 = arith.truncf %37 : vector<8x16xf32> to vector<8x16xbf16>
    %c0_27 = arith.constant 0 : index
    %c0_28 = arith.constant 0 : index
    %57 = vector.load %arg5[%c0_27, %c0_28] : memref<16x256xbf16, #tpu.memory_space<vmem>>, vector<16x256xbf16>
    %cst_29 = arith.constant dense<0.000000e+00> : vector<8x256xf32>
    %58 = tpu.matmul %56, %57, %cst_29 {dimension_numbers = #tpu.dot_dimension_numbers<[1], [0], [0], [1], [0, 0, 1, 1], [], []>} : vector<8x16xbf16>, vector<16x256xbf16>, vector<8x256xf32> -> vector<8x256xf32>
    %59 = arith.truncf %55 : vector<8x16xf32> to vector<8x16xbf16>
    %c0_30 = arith.constant 0 : index
    %c0_31 = arith.constant 0 : index
    %60 = vector.load %arg6[%c0_30, %c0_31] : memref<16x256xbf16, #tpu.memory_space<vmem>>, vector<16x256xbf16>
    %cst_32 = arith.constant dense<0.000000e+00> : vector<8x256xf32>
    %61 = tpu.matmul %59, %60, %cst_32 {dimension_numbers = #tpu.dot_dimension_numbers<[1], [0], [0], [1], [0, 0, 1, 1], [], []>} : vector<8x16xbf16>, vector<16x256xbf16>, vector<8x256xf32> -> vector<8x256xf32>
    %62 = arith.mulf %17, %61 : vector<8x256xf32>
    %63 = arith.mulf %62, %58 : vector<8x256xf32>
    %c4_33 = arith.constant 4 : index
    %c0_34 = arith.constant 0 : index
    %c0_35 = arith.constant 0 : index
    %64 = vector.load %arg8[%c4_33, %c0_34, %c0_35] : memref<9x8x8xbf16, #tpu.memory_space<vmem>>, vector<1x8x8xbf16>
    %65 = vector.shape_cast %64 : vector<1x8x8xbf16> to vector<8x8xbf16>
    %66 = arith.truncf %17 : vector<8x256xf32> to vector<8x256xbf16>
    %cst_36 = arith.constant dense<0.000000e+00> : vector<8x256xf32>
    %67 = tpu.matmul %65, %66, %cst_36 {dimension_numbers = #tpu.dot_dimension_numbers<[1], [0], [0], [1], [0, 0, 1, 1], [], []>} : vector<8x8xbf16>, vector<8x256xbf16>, vector<8x256xf32> -> vector<8x256xf32>
    %c17_i32 = arith.constant 17 : i32
    %68 = tpu.dynamic_rotate %17 by %c17_i32 dim 1 : vector<8x256xf32>, i32 -> vector<8x256xf32>
    %c0_37 = arith.constant 0 : index
    %c0_38 = arith.constant 0 : index
    %c0_39 = arith.constant 0 : index
    %69 = vector.load %arg8[%c0_37, %c0_38, %c0_39] : memref<9x8x8xbf16, #tpu.memory_space<vmem>>, vector<1x8x8xbf16>
    %70 = vector.shape_cast %69 : vector<1x8x8xbf16> to vector<8x8xbf16>
    %71 = arith.truncf %68 : vector<8x256xf32> to vector<8x256xbf16>
    %cst_40 = arith.constant dense<0.000000e+00> : vector<8x256xf32>
    %72 = tpu.matmul %70, %71, %cst_40 {dimension_numbers = #tpu.dot_dimension_numbers<[1], [0], [0], [1], [0, 0, 1, 1], [], []>} : vector<8x8xbf16>, vector<8x256xbf16>, vector<8x256xf32> -> vector<8x256xf32>
    %c0_41 = arith.constant 0 : index
    %c0_42 = arith.constant 0 : index
    %c0_43 = arith.constant 0 : index
    %73 = vector.load %arg7[%c0_41, %c0_42, %c0_43] : memref<9x1x256xf32, #tpu.memory_space<vmem>>, vector<1x1x256xf32>
    %74 = vector.shape_cast %73 : vector<1x1x256xf32> to vector<1x256xf32>
    %75 = vector.broadcast %74 : vector<1x256xf32> to vector<8x256xf32>
    %76 = arith.mulf %72, %75 : vector<8x256xf32>
    %77 = arith.addf %67, %76 : vector<8x256xf32>
    %c16_i32 = arith.constant 16 : i32
    %78 = tpu.dynamic_rotate %17 by %c16_i32 dim 1 : vector<8x256xf32>, i32 -> vector<8x256xf32>
    %c1_44 = arith.constant 1 : index
    %c0_45 = arith.constant 0 : index
    %c0_46 = arith.constant 0 : index
    %79 = vector.load %arg8[%c1_44, %c0_45, %c0_46] : memref<9x8x8xbf16, #tpu.memory_space<vmem>>, vector<1x8x8xbf16>
    %80 = vector.shape_cast %79 : vector<1x8x8xbf16> to vector<8x8xbf16>
    %81 = arith.truncf %78 : vector<8x256xf32> to vector<8x256xbf16>
    %cst_47 = arith.constant dense<0.000000e+00> : vector<8x256xf32>
    %82 = tpu.matmul %80, %81, %cst_47 {dimension_numbers = #tpu.dot_dimension_numbers<[1], [0], [0], [1], [0, 0, 1, 1], [], []>} : vector<8x8xbf16>, vector<8x256xbf16>, vector<8x256xf32> -> vector<8x256xf32>
    %c1_48 = arith.constant 1 : index
    %c0_49 = arith.constant 0 : index
    %c0_50 = arith.constant 0 : index
    %83 = vector.load %arg7[%c1_48, %c0_49, %c0_50] : memref<9x1x256xf32, #tpu.memory_space<vmem>>, vector<1x1x256xf32>
    %84 = vector.shape_cast %83 : vector<1x1x256xf32> to vector<1x256xf32>
    %85 = vector.broadcast %84 : vector<1x256xf32> to vector<8x256xf32>
    %86 = arith.mulf %82, %85 : vector<8x256xf32>
    %87 = arith.addf %77, %86 : vector<8x256xf32>
    %c15_i32 = arith.constant 15 : i32
    %88 = tpu.dynamic_rotate %17 by %c15_i32 dim 1 : vector<8x256xf32>, i32 -> vector<8x256xf32>
    %c2_51 = arith.constant 2 : index
    %c0_52 = arith.constant 0 : index
    %c0_53 = arith.constant 0 : index
    %89 = vector.load %arg8[%c2_51, %c0_52, %c0_53] : memref<9x8x8xbf16, #tpu.memory_space<vmem>>, vector<1x8x8xbf16>
    %90 = vector.shape_cast %89 : vector<1x8x8xbf16> to vector<8x8xbf16>
    %91 = arith.truncf %88 : vector<8x256xf32> to vector<8x256xbf16>
    %cst_54 = arith.constant dense<0.000000e+00> : vector<8x256xf32>
    %92 = tpu.matmul %90, %91, %cst_54 {dimension_numbers = #tpu.dot_dimension_numbers<[1], [0], [0], [1], [0, 0, 1, 1], [], []>} : vector<8x8xbf16>, vector<8x256xbf16>, vector<8x256xf32> -> vector<8x256xf32>
    %c2_55 = arith.constant 2 : index
    %c0_56 = arith.constant 0 : index
    %c0_57 = arith.constant 0 : index
    %93 = vector.load %arg7[%c2_55, %c0_56, %c0_57] : memref<9x1x256xf32, #tpu.memory_space<vmem>>, vector<1x1x256xf32>
    %94 = vector.shape_cast %93 : vector<1x1x256xf32> to vector<1x256xf32>
    %95 = vector.broadcast %94 : vector<1x256xf32> to vector<8x256xf32>
    %96 = arith.mulf %92, %95 : vector<8x256xf32>
    %97 = arith.addf %87, %96 : vector<8x256xf32>
    %c1_i32 = arith.constant 1 : i32
    %98 = tpu.dynamic_rotate %17 by %c1_i32 dim 1 : vector<8x256xf32>, i32 -> vector<8x256xf32>
    %c3_58 = arith.constant 3 : index
    %c0_59 = arith.constant 0 : index
    %c0_60 = arith.constant 0 : index
    %99 = vector.load %arg8[%c3_58, %c0_59, %c0_60] : memref<9x8x8xbf16, #tpu.memory_space<vmem>>, vector<1x8x8xbf16>
    %100 = vector.shape_cast %99 : vector<1x8x8xbf16> to vector<8x8xbf16>
    %101 = arith.truncf %98 : vector<8x256xf32> to vector<8x256xbf16>
    %cst_61 = arith.constant dense<0.000000e+00> : vector<8x256xf32>
    %102 = tpu.matmul %100, %101, %cst_61 {dimension_numbers = #tpu.dot_dimension_numbers<[1], [0], [0], [1], [0, 0, 1, 1], [], []>} : vector<8x8xbf16>, vector<8x256xbf16>, vector<8x256xf32> -> vector<8x256xf32>
    %c3_62 = arith.constant 3 : index
    %c0_63 = arith.constant 0 : index
    %c0_64 = arith.constant 0 : index
    %103 = vector.load %arg7[%c3_62, %c0_63, %c0_64] : memref<9x1x256xf32, #tpu.memory_space<vmem>>, vector<1x1x256xf32>
    %104 = vector.shape_cast %103 : vector<1x1x256xf32> to vector<1x256xf32>
    %105 = vector.broadcast %104 : vector<1x256xf32> to vector<8x256xf32>
    %106 = arith.mulf %102, %105 : vector<8x256xf32>
    %107 = arith.addf %97, %106 : vector<8x256xf32>
    %c255_i32 = arith.constant 255 : i32
    %108 = tpu.dynamic_rotate %17 by %c255_i32 dim 1 : vector<8x256xf32>, i32 -> vector<8x256xf32>
    %c5_65 = arith.constant 5 : index
    %c0_66 = arith.constant 0 : index
    %c0_67 = arith.constant 0 : index
    %109 = vector.load %arg8[%c5_65, %c0_66, %c0_67] : memref<9x8x8xbf16, #tpu.memory_space<vmem>>, vector<1x8x8xbf16>
    %110 = vector.shape_cast %109 : vector<1x8x8xbf16> to vector<8x8xbf16>
    %111 = arith.truncf %108 : vector<8x256xf32> to vector<8x256xbf16>
    %cst_68 = arith.constant dense<0.000000e+00> : vector<8x256xf32>
    %112 = tpu.matmul %110, %111, %cst_68 {dimension_numbers = #tpu.dot_dimension_numbers<[1], [0], [0], [1], [0, 0, 1, 1], [], []>} : vector<8x8xbf16>, vector<8x256xbf16>, vector<8x256xf32> -> vector<8x256xf32>
    %c5_69 = arith.constant 5 : index
    %c0_70 = arith.constant 0 : index
    %c0_71 = arith.constant 0 : index
    %113 = vector.load %arg7[%c5_69, %c0_70, %c0_71] : memref<9x1x256xf32, #tpu.memory_space<vmem>>, vector<1x1x256xf32>
    %114 = vector.shape_cast %113 : vector<1x1x256xf32> to vector<1x256xf32>
    %115 = vector.broadcast %114 : vector<1x256xf32> to vector<8x256xf32>
    %116 = arith.mulf %112, %115 : vector<8x256xf32>
    %117 = arith.addf %107, %116 : vector<8x256xf32>
    %c241_i32 = arith.constant 241 : i32
    %118 = tpu.dynamic_rotate %17 by %c241_i32 dim 1 : vector<8x256xf32>, i32 -> vector<8x256xf32>
    %c6 = arith.constant 6 : index
    %c0_72 = arith.constant 0 : index
    %c0_73 = arith.constant 0 : index
    %119 = vector.load %arg8[%c6, %c0_72, %c0_73] : memref<9x8x8xbf16, #tpu.memory_space<vmem>>, vector<1x8x8xbf16>
    %120 = vector.shape_cast %119 : vector<1x8x8xbf16> to vector<8x8xbf16>
    %121 = arith.truncf %118 : vector<8x256xf32> to vector<8x256xbf16>
    %cst_74 = arith.constant dense<0.000000e+00> : vector<8x256xf32>
    %122 = tpu.matmul %120, %121, %cst_74 {dimension_numbers = #tpu.dot_dimension_numbers<[1], [0], [0], [1], [0, 0, 1, 1], [], []>} : vector<8x8xbf16>, vector<8x256xbf16>, vector<8x256xf32> -> vector<8x256xf32>
    %c6_75 = arith.constant 6 : index
    %c0_76 = arith.constant 0 : index
    %c0_77 = arith.constant 0 : index
    %123 = vector.load %arg7[%c6_75, %c0_76, %c0_77] : memref<9x1x256xf32, #tpu.memory_space<vmem>>, vector<1x1x256xf32>
    %124 = vector.shape_cast %123 : vector<1x1x256xf32> to vector<1x256xf32>
    %125 = vector.broadcast %124 : vector<1x256xf32> to vector<8x256xf32>
    %126 = arith.mulf %122, %125 : vector<8x256xf32>
    %127 = arith.addf %117, %126 : vector<8x256xf32>
    %c240_i32 = arith.constant 240 : i32
    %128 = tpu.dynamic_rotate %17 by %c240_i32 dim 1 : vector<8x256xf32>, i32 -> vector<8x256xf32>
    %c7 = arith.constant 7 : index
    %c0_78 = arith.constant 0 : index
    %c0_79 = arith.constant 0 : index
    %129 = vector.load %arg8[%c7, %c0_78, %c0_79] : memref<9x8x8xbf16, #tpu.memory_space<vmem>>, vector<1x8x8xbf16>
    %130 = vector.shape_cast %129 : vector<1x8x8xbf16> to vector<8x8xbf16>
    %131 = arith.truncf %128 : vector<8x256xf32> to vector<8x256xbf16>
    %cst_80 = arith.constant dense<0.000000e+00> : vector<8x256xf32>
    %132 = tpu.matmul %130, %131, %cst_80 {dimension_numbers = #tpu.dot_dimension_numbers<[1], [0], [0], [1], [0, 0, 1, 1], [], []>} : vector<8x8xbf16>, vector<8x256xbf16>, vector<8x256xf32> -> vector<8x256xf32>
    %c7_81 = arith.constant 7 : index
    %c0_82 = arith.constant 0 : index
    %c0_83 = arith.constant 0 : index
    %133 = vector.load %arg7[%c7_81, %c0_82, %c0_83] : memref<9x1x256xf32, #tpu.memory_space<vmem>>, vector<1x1x256xf32>
    %134 = vector.shape_cast %133 : vector<1x1x256xf32> to vector<1x256xf32>
    %135 = vector.broadcast %134 : vector<1x256xf32> to vector<8x256xf32>
    %136 = arith.mulf %132, %135 : vector<8x256xf32>
    %137 = arith.addf %127, %136 : vector<8x256xf32>
    %c239_i32 = arith.constant 239 : i32
    %138 = tpu.dynamic_rotate %17 by %c239_i32 dim 1 : vector<8x256xf32>, i32 -> vector<8x256xf32>
    %c8 = arith.constant 8 : index
    %c0_84 = arith.constant 0 : index
    %c0_85 = arith.constant 0 : index
    %139 = vector.load %arg8[%c8, %c0_84, %c0_85] : memref<9x8x8xbf16, #tpu.memory_space<vmem>>, vector<1x8x8xbf16>
    %140 = vector.shape_cast %139 : vector<1x8x8xbf16> to vector<8x8xbf16>
    %141 = arith.truncf %138 : vector<8x256xf32> to vector<8x256xbf16>
    %cst_86 = arith.constant dense<0.000000e+00> : vector<8x256xf32>
    %142 = tpu.matmul %140, %141, %cst_86 {dimension_numbers = #tpu.dot_dimension_numbers<[1], [0], [0], [1], [0, 0, 1, 1], [], []>} : vector<8x8xbf16>, vector<8x256xbf16>, vector<8x256xf32> -> vector<8x256xf32>
    %c8_87 = arith.constant 8 : index
    %c0_88 = arith.constant 0 : index
    %c0_89 = arith.constant 0 : index
    %143 = vector.load %arg7[%c8_87, %c0_88, %c0_89] : memref<9x1x256xf32, #tpu.memory_space<vmem>>, vector<1x1x256xf32>
    %144 = vector.shape_cast %143 : vector<1x1x256xf32> to vector<1x256xf32>
    %145 = vector.broadcast %144 : vector<1x256xf32> to vector<8x256xf32>
    %146 = arith.mulf %142, %145 : vector<8x256xf32>
    %147 = arith.addf %137, %146 : vector<8x256xf32>
    %148 = vector.broadcast %2 : vector<8x1xf32> to vector<8x256xf32>
    %149 = arith.addf %147, %148 : vector<8x256xf32>
    %150 = arith.negf %149 : vector<8x256xf32>
    %151 = math.exp %150 : vector<8x256xf32>
    %cst_90 = arith.constant 1.000000e+00 : f32
    %152 = vector.broadcast %cst_90 : f32 to vector<8x256xf32>
    %153 = arith.addf %152, %151 : vector<8x256xf32>
    %154 = arith.divf %152, %153 : vector<8x256xf32>
    %155 = arith.mulf %149, %154 : vector<8x256xf32>
    %cst_91 = arith.constant dense<0.000000e+00> : vector<8xf32>
    %156 = vector.multi_reduction <add>, %155, %cst_91 [1] : vector<8x256xf32> to vector<8xf32>
    %157 = vector.shape_cast %156 : vector<8xf32> to vector<8x1xf32>
    %cst_92 = arith.constant 2.560000e+02 : f32
    %158 = vector.broadcast %cst_92 : f32 to vector<8x1xf32>
    %159 = arith.divf %157, %158 : vector<8x1xf32>
    %160 = arith.addf %159, %5 : vector<8x1xf32>
    %cst_93 = arith.constant dense<0xFF800000> : vector<1xf32>
    %161 = vector.multi_reduction <maximumf>, %160, %cst_93 [0] : vector<8x1xf32> to vector<1xf32>
    %162 = vector.shape_cast %161 : vector<1xf32> to vector<1x1xf32>
    %163 = vector.broadcast %162 : vector<1x1xf32> to vector<8x1xf32>
    %164 = arith.subf %160, %163 : vector<8x1xf32>
    %165 = math.exp %164 : vector<8x1xf32>
    %cst_94 = arith.constant dense<0.000000e+00> : vector<1xf32>
    %166 = vector.multi_reduction <add>, %165, %cst_94 [0] : vector<8x1xf32> to vector<1xf32>
    %167 = vector.shape_cast %166 : vector<1xf32> to vector<1x1xf32>
    %168 = vector.broadcast %167 : vector<1x1xf32> to vector<8x1xf32>
    %169 = arith.divf %165, %168 : vector<8x1xf32>
    %cst_95 = arith.constant dense<0.000000e+00> : vector<8xf32>
    %170 = vector.multi_reduction <add>, %17, %cst_95 [1] : vector<8x256xf32> to vector<8xf32>
    %171 = vector.shape_cast %170 : vector<8xf32> to vector<8x1xf32>
    %cst_96 = arith.constant 2.560000e+02 : f32
    %172 = vector.broadcast %cst_96 : f32 to vector<8x1xf32>
    %173 = arith.divf %171, %172 : vector<8x1xf32>
    %174 = arith.mulf %3, %173 : vector<8x1xf32>
    %175 = arith.addf %174, %4 : vector<8x1xf32>
    %176 = arith.addf %175, %5 : vector<8x1xf32>
    %cst_97 = arith.constant dense<0xFF800000> : vector<1xf32>
    %177 = vector.multi_reduction <maximumf>, %176, %cst_97 [0] : vector<8x1xf32> to vector<1xf32>
    %178 = vector.shape_cast %177 : vector<1xf32> to vector<1x1xf32>
    %179 = vector.broadcast %178 : vector<1x1xf32> to vector<8x1xf32>
    %180 = arith.subf %176, %179 : vector<8x1xf32>
    %181 = math.exp %180 : vector<8x1xf32>
    %cst_98 = arith.constant dense<0.000000e+00> : vector<1xf32>
    %182 = vector.multi_reduction <add>, %181, %cst_98 [0] : vector<8x1xf32> to vector<1xf32>
    %183 = vector.shape_cast %182 : vector<1xf32> to vector<1x1xf32>
    %184 = vector.broadcast %183 : vector<1x1xf32> to vector<8x1xf32>
    %185 = arith.divf %181, %184 : vector<8x1xf32>
    %186 = vector.broadcast %3 : vector<8x1xf32> to vector<8x256xf32>
    %187 = arith.mulf %186, %63 : vector<8x256xf32>
    %188 = vector.broadcast %4 : vector<8x1xf32> to vector<8x256xf32>
    %189 = arith.addf %187, %188 : vector<8x256xf32>
    %190 = vector.broadcast %185 : vector<8x1xf32> to vector<8x256xf32>
    %191 = arith.mulf %155, %190 : vector<8x256xf32>
    %192 = vector.broadcast %169 : vector<8x1xf32> to vector<8x256xf32>
    %193 = arith.mulf %189, %192 : vector<8x256xf32>
    %194 = arith.addf %191, %193 : vector<8x256xf32>
    %195 = arith.negf %194 : vector<8x256xf32>
    %196 = math.exp %195 : vector<8x256xf32>
    %cst_99 = arith.constant 1.000000e+00 : f32
    %197 = vector.broadcast %cst_99 : f32 to vector<8x256xf32>
    %198 = arith.addf %197, %196 : vector<8x256xf32>
    %199 = arith.divf %197, %198 : vector<8x256xf32>
    %c0_100 = arith.constant 0 : index
    %c0_101 = arith.constant 0 : index
    %200 = vector.load %arg10[%c0_100, %c0_101] : memref<8x8xbf16, #tpu.memory_space<vmem>>, vector<8x8xbf16>
    %201 = arith.mulf %199, %17 : vector<8x256xf32>
    %202 = arith.truncf %201 : vector<8x256xf32> to vector<8x256xbf16>
    %cst_102 = arith.constant dense<0.000000e+00> : vector<8x256xf32>
    %203 = tpu.matmul %200, %202, %cst_102 {dimension_numbers = #tpu.dot_dimension_numbers<[1], [0], [0], [1], [0, 0, 1, 1], [], []>} : vector<8x8xbf16>, vector<8x256xbf16>, vector<8x256xf32> -> vector<8x256xf32>
    %c0_103 = arith.constant 0 : index
    %c0_104 = arith.constant 0 : index
    %204 = vector.load %arg11[%c0_103, %c0_104] : memref<8x1xf32, #tpu.memory_space<vmem>>, vector<8x1xf32>
    %205 = vector.broadcast %204 : vector<8x1xf32> to vector<8x256xf32>
    %206 = arith.addf %203, %205 : vector<8x256xf32>
    %207 = arith.negf %206 : vector<8x256xf32>
    %208 = math.exp %207 : vector<8x256xf32>
    %cst_105 = arith.constant 1.000000e+00 : f32
    %209 = vector.broadcast %cst_105 : f32 to vector<8x256xf32>
    %210 = arith.addf %209, %208 : vector<8x256xf32>
    %211 = arith.divf %209, %210 : vector<8x256xf32>
    %212 = arith.mulf %206, %211 : vector<8x256xf32>
    %c0_106 = arith.constant 0 : index
    %c0_107 = arith.constant 0 : index
    %213 = vector.load %arg12[%c0_106, %c0_107] : memref<8x256xf32, #tpu.memory_space<vmem>>, vector<8x256xf32>
    tpu.vector_store %arg12[%c0_106, %c0_107], %212 {strides = array<i32>} : memref<8x256xf32, #tpu.memory_space<vmem>>, vector<8x256xf32>,
    return
  }
  func.func @transform_0(%arg0: i32) -> (i32, i32) {
    %c0_i32 = arith.constant 0 : i32
    %c0_i32_0 = arith.constant 0 : i32
    return %c0_i32, %arg0 : i32, i32
  }
  func.func @transform_1(%arg0: i32) -> (i32, i32) {
    %c0_i32 = arith.constant 0 : i32
    %c0_i32_0 = arith.constant 0 : i32
    %c0_i32_1 = arith.constant 0 : i32
    return %c0_i32, %c0_i32_0 : i32, i32
  }
  func.func @transform_2(%arg0: i32) -> (i32, i32) {
    %c0_i32 = arith.constant 0 : i32
    %c0_i32_0 = arith.constant 0 : i32
    %c0_i32_1 = arith.constant 0 : i32
    return %c0_i32, %c0_i32_0 : i32, i32
  }
  func.func @transform_3(%arg0: i32) -> (i32, i32) {
    %c0_i32 = arith.constant 0 : i32
    %c0_i32_0 = arith.constant 0 : i32
    %c0_i32_1 = arith.constant 0 : i32
    return %c0_i32, %c0_i32_0 : i32, i32
  }
  func.func @transform_4(%arg0: i32) -> (i32, i32) {
    %c0_i32 = arith.constant 0 : i32
    %c0_i32_0 = arith.constant 0 : i32
    %c0_i32_1 = arith.constant 0 : i32
    return %c0_i32, %c0_i32_0 : i32, i32
  }
  func.func @transform_5(%arg0: i32) -> (i32, i32) {
    %c0_i32 = arith.constant 0 : i32
    %c0_i32_0 = arith.constant 0 : i32
    %c0_i32_1 = arith.constant 0 : i32
    return %c0_i32, %c0_i32_0 : i32, i32
  }
  func.func @transform_6(%arg0: i32) -> (i32, i32, i32) {
    %c0_i32 = arith.constant 0 : i32
    %c0_i32_0 = arith.constant 0 : i32
    %c0_i32_1 = arith.constant 0 : i32
    %c0_i32_2 = arith.constant 0 : i32
    return %c0_i32, %c0_i32_0, %c0_i32_1 : i32, i32, i32
  }
  func.func @transform_7(%arg0: i32) -> (i32, i32, i32) {
    %c0_i32 = arith.constant 0 : i32
    %c0_i32_0 = arith.constant 0 : i32
    %c0_i32_1 = arith.constant 0 : i32
    %c0_i32_2 = arith.constant 0 : i32
    return %c0_i32, %c0_i32_0, %c0_i32_1 : i32, i32, i32
  }
  func.func @transform_8(%arg0: i32) -> (i32, i32) {
    %c0_i32 = arith.constant 0 : i32
    %c0_i32_0 = arith.constant 0 : i32
    %c0_i32_1 = arith.constant 0 : i32
    return %c0_i32, %c0_i32_0 : i32, i32
  }
  func.func @transform_9(%arg0: i32) -> (i32, i32) {
    %c0_i32 = arith.constant 0 : i32
    %c0_i32_0 = arith.constant 0 : i32
    %c0_i32_1 = arith.constant 0 : i32
    return %c0_i32, %c0_i32_0 : i32, i32
  }
  func.func @transform_10(%arg0: i32) -> (i32, i32) {
    %c0_i32 = arith.constant 0 : i32
    %c0_i32_0 = arith.constant 0 : i32
    %c0_i32_1 = arith.constant 0 : i32
    return %c0_i32, %c0_i32_0 : i32, i32
  }
  func.func @transform_11(%arg0: i32) -> (i32, i32) {
    %c0_i32 = arith.constant 0 : i32
    %c0_i32_0 = arith.constant 0 : i32
    return %c0_i32, %arg0 : i32, i32
  }
}

</mosaic_0001>

<llo_original>
// kernel: _ema_att_forward.1
$region0: #{_ema_att_forward.1}
  #allocation0 [shape = 'u32[]', space=smem, size = 0x4, offset = 0x4, fixed_abs, tag = 'smem constant byte address 0x4 - core index']
  #allocation1 [shape = 'u32[72,128]{1,0:T(1,128)}', space=vmem, size = 0x9000, scoped, tag = 'internal scratch']
  %s0 = inlined_call_operand.vmem [shape: bf16[8,512], index: 0, kind: input, shape index: {}]
  %s1 = inlined_call_operand.vmem [shape: bf16[16,8], index: 1, kind: input, shape index: {}]
  %s2 = inlined_call_operand.vmem [shape: bf16[256,16], index: 2, kind: input, shape index: {}]
  %s3 = inlined_call_operand.vmem [shape: bf16[256,16], index: 3, kind: input, shape index: {}]
  %s4 = inlined_call_operand.vmem [shape: bf16[16,256], index: 4, kind: input, shape index: {}]
  %s5 = inlined_call_operand.vmem [shape: bf16[16,256], index: 5, kind: input, shape index: {}]
  %s6 = inlined_call_operand.vmem [shape: f32[9,1,256], index: 6, kind: input, shape index: {}]
  %s7 = inlined_call_operand.vmem [shape: bf16[9,8,8], index: 7, kind: input, shape index: {}]
  %s8 = inlined_call_operand.vmem [shape: f32[8,6], index: 8, kind: input, shape index: {}]
  %s9 = inlined_call_operand.vmem [shape: bf16[8,8], index: 9, kind: input, shape index: {}]
  %s10 = inlined_call_operand.vmem [shape: f32[8,1], index: 10, kind: input, shape index: {}]
  %s11 = inlined_call_operand.vmem [shape: f32[8,512], index: 11, kind: output, shape index: {}]
  %s12 = sld [smem:[#allocation0]]
  $region77: #{_ema_att_forward.1} parent=0
    _
  %s14 = ssub.s32 1, %s12
  %s15 = scalar_select 0, %s14, %s12
  loop: start=0, step=1, limit=4
  $region2: #{_ema_att_forward.1} parent=0 // loop_pre_header
    _
  $region3: #{_ema_att_forward.1} parent=0 // loop_header
    %s17 = sphi 0, %s21
    %p18 = scmp.ge.s32.totalorder %s17, 4
    %s27 = sphi 0, %s29
    %s30 = sphi 0, %s27
    %s31 = sphi 0, %s30
    %s47 = sphi 0, %s31
    %s51 = sphi 0, %s51
    %s53 = sphi 0, %s51
    %s54 = sphi 0, %s53
    %s68 = sphi 0, %s54
    %s72 = sphi 0, %s72
    %s74 = sphi 0, %s72
    %s75 = sphi 0, %s74
    %s89 = sphi 0, %s75
    %s93 = sphi 0, %s93
    %s95 = sphi 0, %s93
    %s96 = sphi 0, %s95
    %s110 = sphi 0, %s96
    %s114 = sphi 0, %s114
    %s116 = sphi 0, %s114
    %s117 = sphi 0, %s116
    %s131 = sphi 0, %s117
    %s135 = sphi 0, %s135
    %s137 = sphi 0, %s135
    %s138 = sphi 0, %s137
    %s152 = sphi 0, %s138
    %s156 = sphi 0, %s156
    %s158 = sphi 0, %s156
    %s159 = sphi 0, %s158
    %s173 = sphi 0, %s159
    %s177 = sphi 0, %s177
    %s179 = sphi 0, %s177
    %s180 = sphi 0, %s179
    %s194 = sphi 0, %s180
    %s198 = sphi 0, %s198
    %s200 = sphi 0, %s198
    %s201 = sphi 0, %s200
    %s215 = sphi 0, %s201
    %s219 = sphi 0, %s219
    %s221 = sphi 0, %s219
    %s222 = sphi 0, %s221
    %s236 = sphi 0, %s222
    %s240 = sphi 0, %s240
    %s242 = sphi 0, %s240
    %s243 = sphi 0, %s242
    %s257 = sphi 0, %s243
    %s263 = sphi 0, %s265
    %s266 = sphi 0, %s263
    %s267 = sphi 0, %s266
    %s283 = sphi 0, %s267
  $region4: #{_ema_att_forward.1} parent=0 // loop_header_branch
    %20 = sbr.rel (%p18) target = $region8
  $region5: #{_ema_att_forward.1} parent=0 // loop_body
    %s22 = ssub.s32 %s17, 1
    %s23 = ssub.s32 %s17, 2
    %s24 = sadd.s32 %s17, 1
    %s25 = ssub.s32 %s17, %s24
    %p26 = scmp.eq.s32.totalorder %s25, 0
    %s28 = sadd.s32 %s27, 1
    %s29 = scalar_select %p26, %s27, %s28
    %p32 = pneg %p26
    %p33 = scmp.eq.s32.totalorder %s17, 1
    %p34 = por %p32, %p33
    %p35 = scmp.ne.s32.totalorder %s27, %s30
    %p36 = scmp.eq.s32.totalorder %s17, 0
    %p37 = por %p35, %p36
    %p38 = scmp.ne.s32.totalorder %s27, %s30
    %p39 = scmp.eq.s32.totalorder %s22, 1
    %p40 = por %p38, %p39
    %p41 = scmp.ne.s32.totalorder %s30, %s31
    %p42 = scmp.eq.s32.totalorder %s22, 0
    %p43 = por %p41, %p42
    %p44 = scmp.ne.s32.totalorder %s30, %s31
    %p45 = scmp.eq.s32.totalorder %s23, 1
    %p46 = por %p44, %p45
    %p48 = scmp.ne.s32.totalorder %s31, %s47
    %p49 = scmp.eq.s32.totalorder %s23, 0
    %p50 = por %p48, %p49
    %s52 = sadd.s32 %s51, 1
    %p55 = scmp.eq.s32.totalorder %s17, 1
    %p56 = scmp.ne.s32.totalorder %s51, %s53
    %p57 = scmp.eq.s32.totalorder %s17, 0
    %p58 = por %p56, %p57
    %p59 = scmp.ne.s32.totalorder %s51, %s53
    %p60 = scmp.eq.s32.totalorder %s22, 1
    %p61 = por %p59, %p60
    %p62 = scmp.ne.s32.totalorder %s53, %s54
    %p63 = scmp.eq.s32.totalorder %s22, 0
    %p64 = por %p62, %p63
    %p65 = scmp.ne.s32.totalorder %s53, %s54
    %p66 = scmp.eq.s32.totalorder %s23, 1
    %p67 = por %p65, %p66
    %p69 = scmp.ne.s32.totalorder %s54, %s68
    %p70 = scmp.eq.s32.totalorder %s23, 0
    %p71 = por %p69, %p70
    %s73 = sadd.s32 %s72, 1
    %p76 = scmp.eq.s32.totalorder %s17, 1
    %p77 = scmp.ne.s32.totalorder %s72, %s74
    %p78 = scmp.eq.s32.totalorder %s17, 0
    %p79 = por %p77, %p78
    %p80 = scmp.ne.s32.totalorder %s72, %s74
    %p81 = scmp.eq.s32.totalorder %s22, 1
    %p82 = por %p80, %p81
    %p83 = scmp.ne.s32.totalorder %s74, %s75
    %p84 = scmp.eq.s32.totalorder %s22, 0
    %p85 = por %p83, %p84
    %p86 = scmp.ne.s32.totalorder %s74, %s75
    %p87 = scmp.eq.s32.totalorder %s23, 1
    %p88 = por %p86, %p87
    %p90 = scmp.ne.s32.totalorder %s75, %s89
    %p91 = scmp.eq.s32.totalorder %s23, 0
    %p92 = por %p90, %p91
    %s94 = sadd.s32 %s93, 1
    %p97 = scmp.eq.s32.totalorder %s17, 1
    %p98 = scmp.ne.s32.totalorder %s93, %s95
    %p99 = scmp.eq.s32.totalorder %s17, 0
    %p100 = por %p98, %p99
    %p101 = scmp.ne.s32.totalorder %s93, %s95
    %p102 = scmp.eq.s32.totalorder %s22, 1
    %p103 = por %p101, %p102
    %p104 = scmp.ne.s32.totalorder %s95, %s96
    %p105 = scmp.eq.s32.totalorder %s22, 0
    %p106 = por %p104, %p105
    %p107 = scmp.ne.s32.totalorder %s95, %s96
    %p108 = scmp.eq.s32.totalorder %s23, 1
    %p109 = por %p107, %p108
    %p111 = scmp.ne.s32.totalorder %s96, %s110
    %p112 = scmp.eq.s32.totalorder %s23, 0
    %p113 = por %p111, %p112
    %s115 = sadd.s32 %s114, 1
    %p118 = scmp.eq.s32.totalorder %s17, 1
    %p119 = scmp.ne.s32.totalorder %s114, %s116
    %p120 = scmp.eq.s32.totalorder %s17, 0
    %p121 = por %p119, %p120
    %p122 = scmp.ne.s32.totalorder %s114, %s116
    %p123 = scmp.eq.s32.totalorder %s22, 1
    %p124 = por %p122, %p123
    %p125 = scmp.ne.s32.totalorder %s116, %s117
    %p126 = scmp.eq.s32.totalorder %s22, 0
    %p127 = por %p125, %p126
    %p128 = scmp.ne.s32.totalorder %s116, %s117
    %p129 = scmp.eq.s32.totalorder %s23, 1
    %p130 = por %p128, %p129
    %p132 = scmp.ne.s32.totalorder %s117, %s131
    %p133 = scmp.eq.s32.totalorder %s23, 0
    %p134 = por %p132, %p133
    %s136 = sadd.s32 %s135, 1
    %p139 = scmp.eq.s32.totalorder %s17, 1
    %p140 = scmp.ne.s32.totalorder %s135, %s137
    %p141 = scmp.eq.s32.totalorder %s17, 0
    %p142 = por %p140, %p141
    %p143 = scmp.ne.s32.totalorder %s135, %s137
    %p144 = scmp.eq.s32.totalorder %s22, 1
    %p145 = por %p143, %p144
    %p146 = scmp.ne.s32.totalorder %s137, %s138
    %p147 = scmp.eq.s32.totalorder %s22, 0
    %p148 = por %p146, %p147
    %p149 = scmp.ne.s32.totalorder %s137, %s138
    %p150 = scmp.eq.s32.totalorder %s23, 1
    %p151 = por %p149, %p150
    %p153 = scmp.ne.s32.totalorder %s138, %s152
    %p154 = scmp.eq.s32.totalorder %s23, 0
    %p155 = por %p153, %p154
    %s157 = sadd.s32 %s156, 1
    %p160 = scmp.eq.s32.totalorder %s17, 1
    %p161 = scmp.ne.s32.totalorder %s156, %s158
    %p162 = scmp.eq.s32.totalorder %s17, 0
    %p163 = por %p161, %p162
    %p164 = scmp.ne.s32.totalorder %s156, %s158
    %p165 = scmp.eq.s32.totalorder %s22, 1
    %p166 = por %p164, %p165
    %p167 = scmp.ne.s32.totalorder %s158, %s159
    %p168 = scmp.eq.s32.totalorder %s22, 0
    %p169 = por %p167, %p168
    %p170 = scmp.ne.s32.totalorder %s158, %s159
    %p171 = scmp.eq.s32.totalorder %s23, 1
    %p172 = por %p170, %p171
    %p174 = scmp.ne.s32.totalorder %s159, %s173
    %p175 = scmp.eq.s32.totalorder %s23, 0
    %p176 = por %p174, %p175
    %s178 = sadd.s32 %s177, 1
    %p181 = scmp.eq.s32.totalorder %s17, 1
    %p182 = scmp.ne.s32.totalorder %s177, %s179
    %p183 = scmp.eq.s32.totalorder %s17, 0
    %p184 = por %p182, %p183
    %p185 = scmp.ne.s32.totalorder %s177, %s179
    %p186 = scmp.eq.s32.totalorder %s22, 1
    %p187 = por %p185, %p186
    %p188 = scmp.ne.s32.totalorder %s179, %s180
    %p189 = scmp.eq.s32.totalorder %s22, 0
    %p190 = por %p188, %p189
    %p191 = scmp.ne.s32.totalorder %s179, %s180
    %p192 = scmp.eq.s32.totalorder %s23, 1
    %p193 = por %p191, %p192
    %p195 = scmp.ne.s32.totalorder %s180, %s194
    %p196 = scmp.eq.s32.totalorder %s23, 0
    %p197 = por %p195, %p196
    %s199 = sadd.s32 %s198, 1
    %p202 = scmp.eq.s32.totalorder %s17, 1
    %p203 = scmp.ne.s32.totalorder %s198, %s200
    %p204 = scmp.eq.s32.totalorder %s17, 0
    %p205 = por %p203, %p204
    %p206 = scmp.ne.s32.totalorder %s198, %s200
    %p207 = scmp.eq.s32.totalorder %s22, 1
    %p208 = por %p206, %p207
    %p209 = scmp.ne.s32.totalorder %s200, %s201
    %p210 = scmp.eq.s32.totalorder %s22, 0
    %p211 = por %p209, %p210
    %p212 = scmp.ne.s32.totalorder %s200, %s201
    %p213 = scmp.eq.s32.totalorder %s23, 1
    %p214 = por %p212, %p213
    %p216 = scmp.ne.s32.totalorder %s201, %s215
    %p217 = scmp.eq.s32.totalorder %s23, 0
    %p218 = por %p216, %p217
    %s220 = sadd.s32 %s219, 1
    %p223 = scmp.eq.s32.totalorder %s17, 1
    %p224 = scmp.ne.s32.totalorder %s219, %s221
    %p225 = scmp.eq.s32.totalorder %s17, 0
    %p226 = por %p224, %p225
    %p227 = scmp.ne.s32.totalorder %s219, %s221
    %p228 = scmp.eq.s32.totalorder %s22, 1
    %p229 = por %p227, %p228
    %p230 = scmp.ne.s32.totalorder %s221, %s222
    %p231 = scmp.eq.s32.totalorder %s22, 0
    %p232 = por %p230, %p231
    %p233 = scmp.ne.s32.totalorder %s221, %s222
    %p234 = scmp.eq.s32.totalorder %s23, 1
    %p235 = por %p233, %p234
    %p237 = scmp.ne.s32.totalorder %s222, %s236
    %p238 = scmp.eq.s32.totalorder %s23, 0
    %p239 = por %p237, %p238
    %s241 = sadd.s32 %s240, 1
    %p244 = scmp.eq.s32.totalorder %s17, 1
    %p245 = scmp.ne.s32.totalorder %s240, %s242
    %p246 = scmp.eq.s32.totalorder %s17, 0
    %p247 = por %p245, %p246
    %p248 = scmp.ne.s32.totalorder %s240, %s242
    %p249 = scmp.eq.s32.totalorder %s22, 1
    %p250 = por %p248, %p249
    %p251 = scmp.ne.s32.totalorder %s242, %s243
    %p252 = scmp.eq.s32.totalorder %s22, 0
    %p253 = por %p251, %p252
    %p254 = scmp.ne.s32.totalorder %s242, %s243
    %p255 = scmp.eq.s32.totalorder %s23, 1
    %p256 = por %p254, %p255
    %p258 = scmp.ne.s32.totalorder %s243, %s257
    %p259 = scmp.eq.s32.totalorder %s23, 0
    %p260 = por %p258, %p259
    %s261 = ssub.s32 %s17, %s24
    %p262 = scmp.eq.s32.totalorder %s261, 0
    %s264 = sadd.s32 %s263, 1
    %s265 = scalar_select %p262, %s263, %s264
    %p268 = pneg %p262
    %p269 = scmp.eq.s32.totalorder %s17, 1
    %p270 = por %p268, %p269
    %p271 = scmp.ne.s32.totalorder %s263, %s266
    %p272 = scmp.eq.s32.totalorder %s17, 0
    %p273 = por %p271, %p272
    %p274 = scmp.ne.s32.totalorder %s263, %s266
    %p275 = scmp.eq.s32.totalorder %s22, 1
    %p276 = por %p274, %p275
    %p277 = scmp.ne.s32.totalorder %s266, %s267
    %p278 = scmp.eq.s32.totalorder %s22, 0
    %p279 = por %p277, %p278
    %p280 = scmp.ne.s32.totalorder %s266, %s267
    %p281 = scmp.eq.s32.totalorder %s23, 1
    %p282 = por %p280, %p281
    %p284 = scmp.ne.s32.totalorder %s267, %s283
    %p285 = scmp.eq.s32.totalorder %s23, 0
    %p286 = por %p284, %p285
    %p287 = scmp.le.s32.totalorder 1, %s17
    %p288 = scmp.lt.s32.totalorder %s17, 3
    %p289 = pnand %p287, %p288
    %p290 = pneg %p289
    // Predicated region
    $region9: #{_ema_att_forward.1} parent=5 // pred_check
      _
    $region10: #{_ema_att_forward.1} parent=5 // pred_check_branch
      %292 = sbr.rel (%p289) target = $region12
    $region11: #{_ema_att_forward.1} parent=5 // pred_region
      %s293 = ssub.s32 %s17, 1
      // Predicated region
      $region13: #{_ema_att_forward.1} parent=11 // pred_check
        %p294 = pneg %p64
      $region14: #{_ema_att_forward.1} parent=11 // pred_check_branch
        %296 = sbr.rel (%p294) target = $region16
      $region15: #{_ema_att_forward.1} parent=11 // pred_region
        _
      $region16: #{_ema_att_forward.1} parent=11 // pred_fallthru
        _
      // Predicated region
      $region17: #{_ema_att_forward.1} parent=11 // pred_check
        %p297 = pneg %p85
      $region18: #{_ema_att_forward.1} parent=11 // pred_check_branch
        %299 = sbr.rel (%p297) target = $region20
      $region19: #{_ema_att_forward.1} parent=11 // pred_region
        _
      $region20: #{_ema_att_forward.1} parent=11 // pred_fallthru
        _
      // Predicated region
      $region21: #{_ema_att_forward.1} parent=11 // pred_check
        %p300 = pneg %p106
      $region22: #{_ema_att_forward.1} parent=11 // pred_check_branch
        %302 = sbr.rel (%p300) target = $region24
      $region23: #{_ema_att_forward.1} parent=11 // pred_region
        _
      $region24: #{_ema_att_forward.1} parent=11 // pred_fallthru
        _
      // Predicated region
      $region25: #{_ema_att_forward.1} parent=11 // pred_check
        %p303 = pneg %p127
      $region26: #{_ema_att_forward.1} parent=11 // pred_check_branch
        %305 = sbr.rel (%p303) target = $region28
      $region27: #{_ema_att_forward.1} parent=11 // pred_region
        _
      $region28: #{_ema_att_forward.1} parent=11 // pred_fallthru
        _
      // Predicated region
      $region29: #{_ema_att_forward.1} parent=11 // pred_check
        %p306 = pneg %p148
      $region30: #{_ema_att_forward.1} parent=11 // pred_check_branch
        %308 = sbr.rel (%p306) target = $region32
      $region31: #{_ema_att_forward.1} parent=11 // pred_region
        _
      $region32: #{_ema_att_forward.1} parent=11 // pred_fallthru
        _
      // Predicated region
      $region33: #{_ema_att_forward.1} parent=11 // pred_check
        %p309 = pneg %p169
      $region34: #{_ema_att_forward.1} parent=11 // pred_check_branch
        %311 = sbr.rel (%p309) target = $region36
      $region35: #{_ema_att_forward.1} parent=11 // pred_region
        _
      $region36: #{_ema_att_forward.1} parent=11 // pred_fallthru
        _
      // Predicated region
      $region37: #{_ema_att_forward.1} parent=11 // pred_check
        %p312 = pneg %p190
      $region38: #{_ema_att_forward.1} parent=11 // pred_check_branch
        %314 = sbr.rel (%p312) target = $region40
      $region39: #{_ema_att_forward.1} parent=11 // pred_region
        _
      $region40: #{_ema_att_forward.1} parent=11 // pred_fallthru
        _
      // Predicated region
      $region41: #{_ema_att_forward.1} parent=11 // pred_check
        %p315 = pneg %p211
      $region42: #{_ema_att_forward.1} parent=11 // pred_check_branch
        %317 = sbr.rel (%p315) target = $region44
      $region43: #{_ema_att_forward.1} parent=11 // pred_region
        _
      $region44: #{_ema_att_forward.1} parent=11 // pred_fallthru
        _
      // Predicated region
      $region45: #{_ema_att_forward.1} parent=11 // pred_check
        %p318 = pneg %p232
      $region46: #{_ema_att_forward.1} parent=11 // pred_check_branch
        %320 = sbr.rel (%p318) target = $region48
      $region47: #{_ema_att_forward.1} parent=11 // pred_region
        _
      $region48: #{_ema_att_forward.1} parent=11 // pred_fallthru
        _
      // Predicated region
      $region49: #{_ema_att_forward.1} parent=11 // pred_check
        %p321 = pneg %p253
      $region50: #{_ema_att_forward.1} parent=11 // pred_check_branch
        %323 = sbr.rel (%p321) target = $region52
      $region51: #{_ema_att_forward.1} parent=11 // pred_region
        _
      $region52: #{_ema_att_forward.1} parent=11 // pred_fallthru
        _
    $region12: #{_ema_att_forward.1} parent=5 // pred_fallthru
      _
    %p324 = scmp.lt.s32.totalorder %s17, 2
    // Predicated region
    $region53: #{_ema_att_forward.1} parent=5 // pred_check
      %p325 = pneg %p324
    $region54: #{_ema_att_forward.1} parent=5 // pred_check_branch
      %327 = sbr.rel (%p325) target = $region56
    $region55: #{_ema_att_forward.1} parent=5 // pred_region
      // Predicated region
      $region57: #{_ema_att_forward.1} parent=55 // pred_check
        %p328 = pneg %p37
      $region58: #{_ema_att_forward.1} parent=55 // pred_check_branch
        %330 = sbr.rel (%p328) target = $region60
      $region59: #{_ema_att_forward.1} parent=55 // pred_region
        %s331 = smul.u32 2, %s17
        %p332 = scmp.lt.s32.totalorder %s331, 3
        %s333 = scalar_select %p332, %s331, 3
        %s334 = smul.addr %s333, 4
        %s335 = scalar_lea.vmem %s0, %s334
        %s336 = smul.u32 2, %s17
      $region60: #{_ema_att_forward.1} parent=55 // pred_fallthru
        _
    $region56: #{_ema_att_forward.1} parent=5 // pred_fallthru
      _
    %p337 = scmp.le.s32.totalorder 1, %s17
    %p338 = scmp.lt.s32.totalorder %s17, 3
    %p339 = pnand %p337, %p338
    %p340 = pneg %p339
    // Predicated region
    $region61: #{_ema_att_forward.1} parent=5 // pred_check
      _
    $region62: #{_ema_att_forward.1} parent=5 // pred_check_branch
      %342 = sbr.rel (%p339) target = $region64
    $region63: #{_ema_att_forward.1} parent=5 // pred_region
      %s343 = ssub.s32 %s17, 1
      %s344 = smul.u32 2, %s22
      %p345 = scmp.lt.s32.totalorder %s344, 3
      %s346 = scalar_select %p345, %s344, 3
      %s347 = smul.addr %s346, 4
      %s348 = scalar_lea.vmem %s0, %s347
      %p349 = pneg %p43
      %p350 = pneg %p40
      %p351 = pneg %p64
      %p352 = pneg %p61
      %p353 = pneg %p85
      %p354 = pneg %p82
      %p355 = pneg %p106
      %p356 = pneg %p103
      %p357 = pneg %p127
      %p358 = pneg %p124
      %p359 = pneg %p148
      %p360 = pneg %p145
      %p361 = pneg %p169
      %p362 = pneg %p166
      %p363 = pneg %p190
      %p364 = pneg %p187
      %p365 = pneg %p211
      %p366 = pneg %p208
      %p367 = pneg %p232
      %p368 = pneg %p229
      %p369 = pneg %p253
      %p370 = pneg %p250
      %p371 = pneg %p279
      %p372 = pneg %p276
      %s373 = smul.u32 2, %s22
      %p374 = scmp.lt.s32.totalorder %s373, 3
      %s375 = scalar_select %p374, %s373, 3
      %s376 = smul.addr %s375, 8
      %s377 = scalar_lea.vmem %s11, %s376
      %s378 = smul.u32 2, %s22
      %p379 = scmp.lt.s32.totalorder %s378, 3
      %s380 = scalar_select %p379, %s378, 3
      %s381 = smul.addr %s380, 4
      %s382 = scalar_lea.vmem %s0, %s381
      %s383 = smul.u32 2, %s22
      %s384 = smul.u32 2, %s22
      %p385 = scmp.lt.s32.totalorder %s384, 3
      %s386 = scalar_select %p385, %s384, 3
      %s387 = smul.addr %s386, 8
      %s388 = scalar_lea.vmem %s11, %s387
      %s389 = smul.u32 2, %s22
      %v391 = vld [vmem:[%s8] sm:$0xff]
      %v392 = vld [vmem:[%s382] sm:$0xff]
      %v393 = vld [vmem:[%s1] sm:$0xf]
      %v394 = vld [vmem:[%s1 + $0x4] sm:$0xf]
      %v397 = vunpack.c.l.b16 %v393
      %v398 = vunpack.c.l.b16 %v394
      %v399 = vpack.c.b16 %v398, %v397
      %v401 = vunpack.c.l.b16 %v392
      %v402 = vunpack.c.h.b16 %v392
      %v403 = vpack.c.b16 %v401, %v401
      %v404 = vpack.c.b16 %v402, %v402
      %vm405 = vcmask 64512
      %v407 = vsel %vm405, %v399, 0
      %vm409 = vcmask 1043456
      %v411 = vsel %vm409, %v403, 0
      %v414 = vsel %vm409, %v404, 0
      %416 = vmatpush.bf16.msra.mxu0 0
      %417 = vmatpush.bf16.msra.mxu0 0
      %418 = vmatpush.bf16.msra.mxu0 0
      %419 = vmatpush.bf16.msra.mxu0 0
      %420 = vmatpush.bf16.msra.mxu0 0
      %421 = vmatpush.bf16.msra.mxu0 0
      %422 = vmatpush.bf16.msra.mxu0 0
      %423 = vmatpush.bf16.msra.mxu0 %v411
      %424 = vmatmul.bf16.gmra.mxu0 %v407
      %v425 = vpop.f32.mrf.mxu0
      %v426 = vadd.f32 0.0, %v425
      %v427 = vpop.f32.mrf.mxu0
      %v428 = vadd.f32 0.0, %v427
      %429 = vdwg.mxu0
      %430 = vmatpush.bf16.msra.mxu0 0
      %431 = vmatpush.bf16.msra.mxu0 0
      %432 = vmatpush.bf16.msra.mxu0 0
      %433 = vmatpush.bf16.msra.mxu0 0
      %434 = vmatpush.bf16.msra.mxu0 0
      %435 = vmatpush.bf16.msra.mxu0 0
      %436 = vmatpush.bf16.msra.mxu0 0
      %437 = vmatpush.bf16.msra.mxu0 %v414
      %438 = vmatmul.bf16.gmra.mxu0 %v407
      %v439 = vpop.f32.mrf.mxu0
      %v440 = vadd.f32 0.0, %v439
      %v441 = vpop.f32.mrf.mxu0
      %v442 = vadd.f32 0.0, %v441
      %443 = vdwg.mxu0
      %445 = vset.pattern.permute.xlu0 0
      %446 = vperm.xlu0 %445, %v391
      %v447 = vpop.permute.xlu0 %446
      %v449 = vadd.f32 %v426, %v447
      %v450 = vadd.f32 %v440, %v447
      %v451 = vxor.u32 %v449, 2147483648
      %v452 = vxor.u32 %v450, 2147483648
      %v453 = vmul.f32 %v451, 1.442695
      %v454 = vpow.pop %v453
      %v455 = vmul.f32 %v452, 1.442695
      %v456 = vpow.pop %v455
      %v457 = vadd.f32 %v454, 1.0
      %v458 = vadd.f32 %v456, 1.0
      %v459 = vrcp.pop %v457
      %v460 = vmul.f32 %v457, %v459
      %v461 = vsub.f32 1.0, %v460
      %v462 = vmul.f32 %v459, %v461
      %v463 = vadd.f32 %v459, %v462
      %vm464 = vweird.f32 %v457
      %vm465 = vweird.f32 %v459
      %vm466 = vmor %vm464, %vm465
      %v467 = vsel %vm466, %v459, %v463
      %v468 = vand.u32 2147483647, %v457
      %vm469 = vcmp.eq.f32.partialorder %v468, 8.507059e+37
      %v470 = vand.u32 %v457, 2147483648
      %v471 = vor.u32 1.1754944e-38, %v470
      %v472 = vsel %vm469, %v471, %v467
      %v473 = vmul.f32 1.0, %v472
      %v474 = vrcp.pop %v458
      %v475 = vmul.f32 %v458, %v474
      %v476 = vsub.f32 1.0, %v475
      %v477 = vmul.f32 %v474, %v476
      %v478 = vadd.f32 %v474, %v477
      %vm479 = vweird.f32 %v458
      %vm480 = vweird.f32 %v474
      %vm481 = vmor %vm479, %vm480
      %v482 = vsel %vm481, %v474, %v478
      %v483 = vand.u32 2147483647, %v458
      %vm484 = vcmp.eq.f32.partialorder %v483, 8.507059e+37
      %v485 = vand.u32 %v458, 2147483648
      %v486 = vor.u32 1.1754944e-38, %v485
      %v487 = vsel %vm484, %v486, %v482
      %v488 = vmul.f32 1.0, %v487
      %v489 = vmul.f32 %v449, %v473
      %v490 = vmul.f32 %v450, %v488
      %v491 = vpack.c.bf16 %v428, %v428
      %v492 = vpack.c.bf16 %v442, %v442
      %v493 = vld [vmem:[%s2] sm:$0xf]
      %v494 = vld [vmem:[%s2 + $0x4] sm:$0xf]
      %v495 = vld [vmem:[%s2 + $0x8] sm:$0xf]
      %v496 = vld [vmem:[%s2 + $0xc] sm:$0xf]
      %v497 = vld [vmem:[%s2 + $0x10] sm:$0xf]
      %v498 = vld [vmem:[%s2 + $0x14] sm:$0xf]
      %v499 = vld [vmem:[%s2 + $0x18] sm:$0xf]
      %v500 = vld [vmem:[%s2 + $0x1c] sm:$0xf]
      %v501 = vld [vmem:[%s2 + $0x20] sm:$0xf]
      %v502 = vld [vmem:[%s2 + $0x24] sm:$0xf]
      %v503 = vld [vmem:[%s2 + $0x28] sm:$0xf]
      %v504 = vld [vmem:[%s2 + $0x2c] sm:$0xf]
      %v505 = vld [vmem:[%s2 + $0x30] sm:$0xf]
      %v506 = vld [vmem:[%s2 + $0x34] sm:$0xf]
      %v507 = vld [vmem:[%s2 + $0x38] sm:$0xf]
      %v508 = vld [vmem:[%s2 + $0x3c] sm:$0xf]
      %v509 = vld [vmem:[%s2 + $0x40] sm:$0xf]
      %v510 = vld [vmem:[%s2 + $0x44] sm:$0xf]
      %v511 = vld [vmem:[%s2 + $0x48] sm:$0xf]
      %v512 = vld [vmem:[%s2 + $0x4c] sm:$0xf]
      %v513 = vld [vmem:[%s2 + $0x50] sm:$0xf]
      %v514 = vld [vmem:[%s2 + $0x54] sm:$0xf]
      %v515 = vld [vmem:[%s2 + $0x58] sm:$0xf]
      %v516 = vld [vmem:[%s2 + $0x5c] sm:$0xf]
      %v517 = vld [vmem:[%s2 + $0x60] sm:$0xf]
      %v518 = vld [vmem:[%s2 + $0x64] sm:$0xf]
      %v519 = vld [vmem:[%s2 + $0x68] sm:$0xf]
      %v520 = vld [vmem:[%s2 + $0x6c] sm:$0xf]
      %v521 = vld [vmem:[%s2 + $0x70] sm:$0xf]
      %v522 = vld [vmem:[%s2 + $0x74] sm:$0xf]
      %v523 = vld [vmem:[%s2 + $0x78] sm:$0xf]
      %v524 = vld [vmem:[%s2 + $0x7c] sm:$0xf]
      %525 = vset.pattern.permute.xlu0 1
      %526 = vperm.xlu0 %525, %v391
      %v527 = vpop.permute.xlu0 %526
      %v561 = vunpack.c.l.b16 %v493
      %v562 = vunpack.c.l.b16 %v494
      %v563 = vunpack.c.l.b16 %v495
      %v564 = vunpack.c.l.b16 %v496
      %v565 = vunpack.c.l.b16 %v497
      %v566 = vunpack.c.l.b16 %v498
      %v567 = vunpack.c.l.b16 %v499
      %v568 = vunpack.c.l.b16 %v500
      %v569 = vunpack.c.l.b16 %v501
      %v570 = vunpack.c.l.b16 %v502
      %v571 = vunpack.c.l.b16 %v503
      %v572 = vunpack.c.l.b16 %v504
      %v573 = vunpack.c.l.b16 %v505
      %v574 = vunpack.c.l.b16 %v506
      %v575 = vunpack.c.l.b16 %v507
      %v576 = vunpack.c.l.b16 %v508
      %v577 = vunpack.c.l.b16 %v509
      %v578 = vunpack.c.l.b16 %v510
      %v579 = vunpack.c.l.b16 %v511
      %v580 = vunpack.c.l.b16 %v512
      %v581 = vunpack.c.l.b16 %v513
      %v582 = vunpack.c.l.b16 %v514
      %v583 = vunpack.c.l.b16 %v515
      %v584 = vunpack.c.l.b16 %v516
      %v585 = vunpack.c.l.b16 %v517
      %v586 = vunpack.c.l.b16 %v518
      %v587 = vunpack.c.l.b16 %v519
      %v588 = vunpack.c.l.b16 %v520
      %v589 = vunpack.c.l.b16 %v521
      %v590 = vunpack.c.l.b16 %v522
      %v591 = vunpack.c.l.b16 %v523
      %v592 = vunpack.c.l.b16 %v524
      %v593 = vpack.c.b16 %v562, %v561
      %v594 = vpack.c.b16 %v564, %v563
      %v595 = vpack.c.b16 %v566, %v565
      %v596 = vpack.c.b16 %v568, %v567
      %v597 = vpack.c.b16 %v570, %v569
      %v598 = vpack.c.b16 %v572, %v571
      %v599 = vpack.c.b16 %v574, %v573
      %v600 = vpack.c.b16 %v576, %v575
      %v601 = vpack.c.b16 %v578, %v577
      %v602 = vpack.c.b16 %v580, %v579
      %v603 = vpack.c.b16 %v582, %v581
      %v604 = vpack.c.b16 %v584, %v583
      %v605 = vpack.c.b16 %v586, %v585
      %v606 = vpack.c.b16 %v588, %v587
      %v607 = vpack.c.b16 %v590, %v589
      %v608 = vpack.c.b16 %v592, %v591
      %625 = vmatpush.bf16.msra.mxu0 %v600
      %626 = vmatpush.bf16.msra.mxu0 %v599
      %627 = vmatpush.bf16.msra.mxu0 %v598
      %628 = vmatpush.bf16.msra.mxu0 %v597
      %629 = vmatpush.bf16.msra.mxu0 %v596
      %630 = vmatpush.bf16.msra.mxu0 %v595
      %631 = vmatpush.bf16.msra.mxu0 %v594
      %632 = vmatpush.bf16.msra.mxu0 %v593
      %633 = vmatmul.bf16.gmra.mxu0 %v491
      %v634 = vpop.f32.mrf.mxu0
      %v635 = vadd.f32 %v527, %v634
      %v636 = vpop.f32.mrf.mxu0
      %637 = vdwg.mxu0
      %638 = vmatpush.bf16.msra.mxu0 %v608
      %639 = vmatpush.bf16.msra.mxu0 %v607
      %640 = vmatpush.bf16.msra.mxu0 %v606
      %641 = vmatpush.bf16.msra.mxu0 %v605
      %642 = vmatpush.bf16.msra.mxu0 %v604
      %643 = vmatpush.bf16.msra.mxu0 %v603
      %644 = vmatpush.bf16.msra.mxu0 %v602
      %645 = vmatpush.bf16.msra.mxu0 %v601
      %646 = vmatmul.bf16.gmra.mxu0 %v492
      %v647 = vpop.f32.mrf.mxu0
      %v648 = vadd.f32 %v635, %v647
      %v649 = vpop.f32.mrf.mxu0
      %650 = vdwg.mxu0
      %v651 = vadd.f32 %v648, 3.0
      %v652 = vmax.f32 %v651, 0.0
      %v653 = vmin.f32 %v652, 6.0
      %v654 = vmul.f32 %v648, %v653
      %v655 = vmul.f32 %v654, 0.16666667
      %v656 = vxor.u32 %v655, 2147483648
      %v657 = vmul.f32 %v656, 1.442695
      %v658 = vpow.pop %v657
      %v659 = vadd.f32 %v658, 1.0
      %v660 = vrcp.pop %v659
      %v661 = vmul.f32 %v659, %v660
      %v662 = vsub.f32 1.0, %v661
      %v663 = vmul.f32 %v660, %v662
      %v664 = vadd.f32 %v660, %v663
      %vm665 = vweird.f32 %v659
      %vm666 = vweird.f32 %v660
      %vm667 = vmor %vm665, %vm666
      %v668 = vsel %vm667, %v660, %v664
      %v669 = vand.u32 2147483647, %v659
      %vm670 = vcmp.eq.f32.partialorder %v669, 8.507059e+37
      %v671 = vand.u32 %v659, 2147483648
      %v672 = vor.u32 1.1754944e-38, %v671
      %v673 = vsel %vm670, %v672, %v668
      %v674 = vmul.f32 1.0, %v673
      %v675 = vld [vmem:[%s3] sm:$0xf]
      %v676 = vld [vmem:[%s3 + $0x4] sm:$0xf]
      %v677 = vld [vmem:[%s3 + $0x8] sm:$0xf]
      %v678 = vld [vmem:[%s3 + $0xc] sm:$0xf]
      %v679 = vld [vmem:[%s3 + $0x10] sm:$0xf]
      %v680 = vld [vmem:[%s3 + $0x14] sm:$0xf]
      %v681 = vld [vmem:[%s3 + $0x18] sm:$0xf]
      %v682 = vld [vmem:[%s3 + $0x1c] sm:$0xf]
      %v683 = vld [vmem:[%s3 + $0x20] sm:$0xf]
      %v684 = vld [vmem:[%s3 + $0x24] sm:$0xf]
      %v685 = vld [vmem:[%s3 + $0x28] sm:$0xf]
      %v686 = vld [vmem:[%s3 + $0x2c] sm:$0xf]
      %v687 = vld [vmem:[%s3 + $0x30] sm:$0xf]
      %v688 = vld [vmem:[%s3 + $0x34] sm:$0xf]
      %v689 = vld [vmem:[%s3 + $0x38] sm:$0xf]
      %v690 = vld [vmem:[%s3 + $0x3c] sm:$0xf]
      %v691 = vld [vmem:[%s3 + $0x40] sm:$0xf]
      %v692 = vld [vmem:[%s3 + $0x44] sm:$0xf]
      %v693 = vld [vmem:[%s3 + $0x48] sm:$0xf]
      %v694 = vld [vmem:[%s3 + $0x4c] sm:$0xf]
      %v695 = vld [vmem:[%s3 + $0x50] sm:$0xf]
      %v696 = vld [vmem:[%s3 + $0x54] sm:$0xf]
      %v697 = vld [vmem:[%s3 + $0x58] sm:$0xf]
      %v698 = vld [vmem:[%s3 + $0x5c] sm:$0xf]
      %v699 = vld [vmem:[%s3 + $0x60] sm:$0xf]
      %v700 = vld [vmem:[%s3 + $0x64] sm:$0xf]
      %v701 = vld [vmem:[%s3 + $0x68] sm:$0xf]
      %v702 = vld [vmem:[%s3 + $0x6c] sm:$0xf]
      %v703 = vld [vmem:[%s3 + $0x70] sm:$0xf]
      %v704 = vld [vmem:[%s3 + $0x74] sm:$0xf]
      %v705 = vld [vmem:[%s3 + $0x78] sm:$0xf]
      %v706 = vld [vmem:[%s3 + $0x7c] sm:$0xf]
      %v739 = vunpack.c.l.b16 %v675
      %v740 = vunpack.c.l.b16 %v676
      %v741 = vunpack.c.l.b16 %v677
      %v742 = vunpack.c.l.b16 %v678
      %v743 = vunpack.c.l.b16 %v679
      %v744 = vunpack.c.l.b16 %v680
      %v745 = vunpack.c.l.b16 %v681
      %v746 = vunpack.c.l.b16 %v682
      %v747 = vunpack.c.l.b16 %v683
      %v748 = vunpack.c.l.b16 %v684
      %v749 = vunpack.c.l.b16 %v685
      %v750 = vunpack.c.l.b16 %v686
      %v751 = vunpack.c.l.b16 %v687
      %v752 = vunpack.c.l.b16 %v688
      %v753 = vunpack.c.l.b16 %v689
      %v754 = vunpack.c.l.b16 %v690
      %v755 = vunpack.c.l.b16 %v691
      %v756 = vunpack.c.l.b16 %v692
      %v757 = vunpack.c.l.b16 %v693
      %v758 = vunpack.c.l.b16 %v694
      %v759 = vunpack.c.l.b16 %v695
      %v760 = vunpack.c.l.b16 %v696
      %v761 = vunpack.c.l.b16 %v697
      %v762 = vunpack.c.l.b16 %v698
      %v763 = vunpack.c.l.b16 %v699
      %v764 = vunpack.c.l.b16 %v700
      %v765 = vunpack.c.l.b16 %v701
      %v766 = vunpack.c.l.b16 %v702
      %v767 = vunpack.c.l.b16 %v703
      %v768 = vunpack.c.l.b16 %v704
      %v769 = vunpack.c.l.b16 %v705
      %v770 = vunpack.c.l.b16 %v706
      %v771 = vpack.c.b16 %v740, %v739
      %v772 = vpack.c.b16 %v742, %v741
      %v773 = vpack.c.b16 %v744, %v743
      %v774 = vpack.c.b16 %v746, %v745
      %v775 = vpack.c.b16 %v748, %v747
      %v776 = vpack.c.b16 %v750, %v749
      %v777 = vpack.c.b16 %v752, %v751
      %v778 = vpack.c.b16 %v754, %v753
      %v779 = vpack.c.b16 %v756, %v755
      %v780 = vpack.c.b16 %v758, %v757
      %v781 = vpack.c.b16 %v760, %v759
      %v782 = vpack.c.b16 %v762, %v761
      %v783 = vpack.c.b16 %v764, %v763
      %v784 = vpack.c.b16 %v766, %v765
      %v785 = vpack.c.b16 %v768, %v767
      %v786 = vpack.c.b16 %v770, %v769
      %803 = vmatpush.bf16.msra.mxu0 %v778
      %804 = vmatpush.bf16.msra.mxu0 %v777
      %805 = vmatpush.bf16.msra.mxu0 %v776
      %806 = vmatpush.bf16.msra.mxu0 %v775
      %807 = vmatpush.bf16.msra.mxu0 %v774
      %808 = vmatpush.bf16.msra.mxu0 %v773
      %809 = vmatpush.bf16.msra.mxu0 %v772
      %810 = vmatpush.bf16.msra.mxu0 %v771
      %811 = vmatmul.bf16.gmra.mxu0 %v491
      %v812 = vpop.f32.mrf.mxu0
      %v813 = vadd.f32 %v527, %v812
      %v814 = vpop.f32.mrf.mxu0
      %815 = vdwg.mxu0
      %816 = vmatpush.bf16.msra.mxu0 %v786
      %817 = vmatpush.bf16.msra.mxu0 %v785
      %818 = vmatpush.bf16.msra.mxu0 %v784
      %819 = vmatpush.bf16.msra.mxu0 %v783
      %820 = vmatpush.bf16.msra.mxu0 %v782
      %821 = vmatpush.bf16.msra.mxu0 %v781
      %822 = vmatpush.bf16.msra.mxu0 %v780
      %823 = vmatpush.bf16.msra.mxu0 %v779
      %824 = vmatmul.bf16.gmra.mxu0 %v492
      %v825 = vpop.f32.mrf.mxu0
      %v826 = vadd.f32 %v813, %v825
      %v827 = vpop.f32.mrf.mxu0
      %828 = vdwg.mxu0
      %v829 = vadd.f32 %v826, 3.0
      %v830 = vmax.f32 %v829, 0.0
      %v831 = vmin.f32 %v830, 6.0
      %v832 = vmul.f32 %v826, %v831
      %v833 = vmul.f32 %v832, 0.16666667
      %v834 = vxor.u32 %v833, 2147483648
      %v835 = vmul.f32 %v834, 1.442695
      %v836 = vpow.pop %v835
      %v837 = vadd.f32 %v836, 1.0
      %v838 = vrcp.pop %v837
      %v839 = vmul.f32 %v837, %v838
      %v840 = vsub.f32 1.0, %v839
      %v841 = vmul.f32 %v838, %v840
      %v842 = vadd.f32 %v838, %v841
      %vm843 = vweird.f32 %v837
      %vm844 = vweird.f32 %v838
      %vm845 = vmor %vm843, %vm844
      %v846 = vsel %vm845, %v838, %v842
      %v847 = vand.u32 2147483647, %v837
      %vm848 = vcmp.eq.f32.partialorder %v847, 8.507059e+37
      %v849 = vand.u32 %v837, 2147483648
      %v850 = vor.u32 1.1754944e-38, %v849
      %v851 = vsel %vm848, %v850, %v846
      %v852 = vmul.f32 1.0, %v851
      %v853 = vpack.c.bf16 %v674, %v674
      %v854 = vld [vmem:[%s4] sm:$0xff]
      %v855 = vld [vmem:[%s4 + $0x8] sm:$0xff]
      %v858 = vunpack.c.l.b16 %v854
      %v859 = vunpack.c.h.b16 %v854
      %v860 = vunpack.c.l.b16 %v855
      %v861 = vunpack.c.h.b16 %v855
      %v862 = vpack.c.b16 %v860, %v858
      %v863 = vpack.c.b16 %v861, %v859
      %vm866 = vcmask 130048
      %v868 = vsel %vm866, %v853, 0
      %870 = vmatpush.bf16.msra.mxu0 0
      %871 = vmatpush.bf16.msra.mxu0 0
      %872 = vmatpush.bf16.msra.mxu0 0
      %873 = vmatpush.bf16.msra.mxu0 0
      %874 = vmatpush.bf16.msra.mxu0 0
      %875 = vmatpush.bf16.msra.mxu0 0
      %876 = vmatpush.bf16.msra.mxu0 0
      %877 = vmatpush.bf16.msra.mxu0 %v862
      %878 = vmatmul.bf16.gmra.mxu0 %v868
      %v879 = vpop.f32.mrf.mxu0
      %v880 = vadd.f32 0.0, %v879
      %v881 = vpop.f32.mrf.mxu0
      %882 = vdwg.mxu0
      %883 = vmatpush.bf16.msra.mxu0 0
      %884 = vmatpush.bf16.msra.mxu0 0
      %885 = vmatpush.bf16.msra.mxu0 0
      %886 = vmatpush.bf16.msra.mxu0 0
      %887 = vmatpush.bf16.msra.mxu0 0
      %888 = vmatpush.bf16.msra.mxu0 0
      %889 = vmatpush.bf16.msra.mxu0 0
      %890 = vmatpush.bf16.msra.mxu0 %v863
      %891 = vmatmul.bf16.gmra.mxu0 %v868
      %v892 = vpop.f32.mrf.mxu0
      %v893 = vadd.f32 0.0, %v892
      %v894 = vpop.f32.mrf.mxu0
      %895 = vdwg.mxu0
      %v896 = vpack.c.bf16 %v852, %v852
      %v897 = vld [vmem:[%s5] sm:$0xff]
      %v898 = vld [vmem:[%s5 + $0x8] sm:$0xff]
      %v901 = vunpack.c.l.b16 %v897
      %v902 = vunpack.c.h.b16 %v897
      %v903 = vunpack.c.l.b16 %v898
      %v904 = vunpack.c.h.b16 %v898
      %v905 = vpack.c.b16 %v903, %v901
      %v906 = vpack.c.b16 %v904, %v902
      %v910 = vsel %vm866, %v896, 0
      %912 = vmatpush.bf16.msra.mxu0 0
      %913 = vmatpush.bf16.msra.mxu0 0
      %914 = vmatpush.bf16.msra.mxu0 0
      %915 = vmatpush.bf16.msra.mxu0 0
      %916 = vmatpush.bf16.msra.mxu0 0
      %917 = vmatpush.bf16.msra.mxu0 0
      %918 = vmatpush.bf16.msra.mxu0 0
      %919 = vmatpush.bf16.msra.mxu0 %v905
      %920 = vmatmul.bf16.gmra.mxu0 %v910
      %v921 = vpop.f32.mrf.mxu0
      %v922 = vadd.f32 0.0, %v921
      %v923 = vpop.f32.mrf.mxu0
      %924 = vdwg.mxu0
      %925 = vmatpush.bf16.msra.mxu0 0
      %926 = vmatpush.bf16.msra.mxu0 0
      %927 = vmatpush.bf16.msra.mxu0 0
      %928 = vmatpush.bf16.msra.mxu0 0
      %929 = vmatpush.bf16.msra.mxu0 0
      %930 = vmatpush.bf16.msra.mxu0 0
      %931 = vmatpush.bf16.msra.mxu0 0
      %932 = vmatpush.bf16.msra.mxu0 %v906
      %933 = vmatmul.bf16.gmra.mxu0 %v910
      %v934 = vpop.f32.mrf.mxu0
      %v935 = vadd.f32 0.0, %v934
      %v936 = vpop.f32.mrf.mxu0
      %937 = vdwg.mxu0
      %v938 = vmul.f32 %v489, %v922
      %v939 = vmul.f32 %v490, %v935
      %v940 = vmul.f32 %v938, %v880
      %v941 = vmul.f32 %v939, %v893
      %s942 = scalar_lea.vmem %s7, 16
      %v943 = vld [vmem:[%s942] sm:$0xf]
      %v944 = vpack.c.bf16 %v489, %v489
      %v945 = vpack.c.bf16 %v490, %v490
      %946 = vrot.lane.b32.xlu0 %v489, 17
      %v947 = vpop.permute.xlu0 %946
      %948 = vrot.lane.b32.xlu0 %v490, 17
      %v949 = vpop.permute.xlu0 %948
      %v950 = vlaneseq
      %v951 = vand.u32 %v950, 127
      %vm952 = vcmp.lt.s32.totalorder %v951, 17
      %v953 = vsel %vm952, %v947, %v949
      %v954 = vsel %vm952, %v949, %v947
      %v955 = vld [vmem:[%s7] sm:$0xf]
      %v956 = vpack.c.bf16 %v954, %v954
      %v957 = vpack.c.bf16 %v953, %v953
      %v959 = vsel %vm405, %v955, 0
      %v962 = vsel %vm409, %v956, 0
      %v965 = vsel %vm409, %v957, 0
      %967 = vmatpush.bf16.msra.mxu0 0
      %968 = vmatpush.bf16.msra.mxu0 0
      %969 = vmatpush.bf16.msra.mxu0 0
      %970 = vmatpush.bf16.msra.mxu0 0
      %971 = vmatpush.bf16.msra.mxu0 0
      %972 = vmatpush.bf16.msra.mxu0 0
      %973 = vmatpush.bf16.msra.mxu0 0
      %974 = vmatpush.bf16.msra.mxu0 %v962
      %975 = vmatmul.bf16.gmra.mxu0 %v959
      %v976 = vpop.f32.mrf.mxu0
      %v977 = vadd.f32 0.0, %v976
      %v978 = vpop.f32.mrf.mxu0
      %979 = vdwg.mxu0
      %980 = vmatpush.bf16.msra.mxu0 0
      %981 = vmatpush.bf16.msra.mxu0 0
      %982 = vmatpush.bf16.msra.mxu0 0
      %983 = vmatpush.bf16.msra.mxu0 0
      %984 = vmatpush.bf16.msra.mxu0 0
      %985 = vmatpush.bf16.msra.mxu0 0
      %986 = vmatpush.bf16.msra.mxu0 0
      %987 = vmatpush.bf16.msra.mxu0 %v965
      %988 = vmatmul.bf16.gmra.mxu0 %v959
      %v989 = vpop.f32.mrf.mxu0
      %v990 = vadd.f32 0.0, %v989
      %v991 = vpop.f32.mrf.mxu0
      %992 = vdwg.mxu0
      %v993 = vld [vmem:[%s6] sm:$0x3]
      %v995 = vperm.slane %v993, 0
      %v996 = vperm.slane %v993, 1
      %v999 = vmul.f32 %v977, %v995
      %v1000 = vmul.f32 %v990, %v996
      %v1002 = vsel %vm405, %v943, 0
      %v1005 = vsel %vm409, %v944, 0
      %v1008 = vsel %vm409, %v945, 0
      %1010 = vmatpush.bf16.msra.mxu0 0
      %1011 = vmatpush.bf16.msra.mxu0 0
      %1012 = vmatpush.bf16.msra.mxu0 0
      %1013 = vmatpush.bf16.msra.mxu0 0
      %1014 = vmatpush.bf16.msra.mxu0 0
      %1015 = vmatpush.bf16.msra.mxu0 0
      %1016 = vmatpush.bf16.msra.mxu0 0
      %1017 = vmatpush.bf16.msra.mxu0 %v1005
      %1018 = vmatmul.bf16.gmra.mxu0 %v1002
      %v1019 = vpop.f32.mrf.mxu0
      %v1020 = vadd.f32 %v999, %v1019
      %v1021 = vpop.f32.mrf.mxu0
      %1022 = vdwg.mxu0
      %1023 = vmatpush.bf16.msra.mxu0 0
      %1024 = vmatpush.bf16.msra.mxu0 0
      %1025 = vmatpush.bf16.msra.mxu0 0
      %1026 = vmatpush.bf16.msra.mxu0 0
      %1027 = vmatpush.bf16.msra.mxu0 0
      %1028 = vmatpush.bf16.msra.mxu0 0
      %1029 = vmatpush.bf16.msra.mxu0 0
      %1030 = vmatpush.bf16.msra.mxu0 %v1008
      %1031 = vmatmul.bf16.gmra.mxu0 %v1002
      %v1032 = vpop.f32.mrf.mxu0
      %v1033 = vadd.f32 %v1000, %v1032
      %v1034 = vpop.f32.mrf.mxu0
      %1035 = vdwg.mxu0
      %1036 = vrot.lane.b32.xlu0 %v489, 16
      %v1037 = vpop.permute.xlu0 %1036
      %1038 = vrot.lane.b32.xlu0 %v490, 16
      %v1039 = vpop.permute.xlu0 %1038
      %vm1040 = vcmp.lt.s32.totalorder %v951, 16
      %v1041 = vsel %vm1040, %v1037, %v1039
      %v1042 = vsel %vm1040, %v1039, %v1037
      %s1043 = scalar_lea.vmem %s7, 4
      %v1044 = vld [vmem:[%s1043] sm:$0xf]
      %v1045 = vpack.c.bf16 %v1042, %v1042
      %v1046 = vpack.c.bf16 %v1041, %v1041
      %v1048 = vsel %vm405, %v1044, 0
      %v1051 = vsel %vm409, %v1045, 0
      %v1054 = vsel %vm409, %v1046, 0
      %1056 = vmatpush.bf16.msra.mxu0 0
      %1057 = vmatpush.bf16.msra.mxu0 0
      %1058 = vmatpush.bf16.msra.mxu0 0
      %1059 = vmatpush.bf16.msra.mxu0 0
      %1060 = vmatpush.bf16.msra.mxu0 0
      %1061 = vmatpush.bf16.msra.mxu0 0
      %1062 = vmatpush.bf16.msra.mxu0 0
      %1063 = vmatpush.bf16.msra.mxu0 %v1051
      %1064 = vmatmul.bf16.gmra.mxu0 %v1048
      %v1065 = vpop.f32.mrf.mxu0
      %v1066 = vadd.f32 0.0, %v1065
      %v1067 = vpop.f32.mrf.mxu0
      %1068 = vdwg.mxu0
      %1069 = vmatpush.bf16.msra.mxu0 0
      %1070 = vmatpush.bf16.msra.mxu0 0
      %1071 = vmatpush.bf16.msra.mxu0 0
      %1072 = vmatpush.bf16.msra.mxu0 0
      %1073 = vmatpush.bf16.msra.mxu0 0
      %1074 = vmatpush.bf16.msra.mxu0 0
      %1075 = vmatpush.bf16.msra.mxu0 0
      %1076 = vmatpush.bf16.msra.mxu0 %v1054
      %1077 = vmatmul.bf16.gmra.mxu0 %v1048
      %v1078 = vpop.f32.mrf.mxu0
      %v1079 = vadd.f32 0.0, %v1078
      %v1080 = vpop.f32.mrf.mxu0
      %1081 = vdwg.mxu0
      %s1082 = scalar_lea.vmem %s6, 2
      %v1083 = vld [vmem:[%s1082] sm:$0x3]
      %v1085 = vperm.slane %v1083, 0
      %v1086 = vperm.slane %v1083, 1
      %v1089 = vmul.f32 %v1066, %v1085
      %v1090 = vmul.f32 %v1079, %v1086
      %v1091 = vadd.f32 %v1020, %v1089
      %v1092 = vadd.f32 %v1033, %v1090
      %1093 = vrot.lane.b32.xlu0 %v489, 15
      %v1094 = vpop.permute.xlu0 %1093
      %1095 = vrot.lane.b32.xlu0 %v490, 15
      %v1096 = vpop.permute.xlu0 %1095
      %vm1097 = vcmp.lt.s32.totalorder %v951, 15
      %v1098 = vsel %vm1097, %v1094, %v1096
      %v1099 = vsel %vm1097, %v1096, %v1094
      %s1100 = scalar_lea.vmem %s7, 8
      %v1101 = vld [vmem:[%s1100] sm:$0xf]
      %v1102 = vpack.c.bf16 %v1099, %v1099
      %v1103 = vpack.c.bf16 %v1098, %v1098
      %v1105 = vsel %vm405, %v1101, 0
      %v1108 = vsel %vm409, %v1102, 0
      %v1111 = vsel %vm409, %v1103, 0
      %1113 = vmatpush.bf16.msra.mxu0 0
      %1114 = vmatpush.bf16.msra.mxu0 0
      %1115 = vmatpush.bf16.msra.mxu0 0
      %1116 = vmatpush.bf16.msra.mxu0 0
      %1117 = vmatpush.bf16.msra.mxu0 0
      %1118 = vmatpush.bf16.msra.mxu0 0
      %1119 = vmatpush.bf16.msra.mxu0 0
      %1120 = vmatpush.bf16.msra.mxu0 %v1108
      %1121 = vmatmul.bf16.gmra.mxu0 %v1105
      %v1122 = vpop.f32.mrf.mxu0
      %v1123 = vadd.f32 0.0, %v1122
      %v1124 = vpop.f32.mrf.mxu0
      %1125 = vdwg.mxu0
      %1126 = vmatpush.bf16.msra.mxu0 0
      %1127 = vmatpush.bf16.msra.mxu0 0
      %1128 = vmatpush.bf16.msra.mxu0 0
      %1129 = vmatpush.bf16.msra.mxu0 0
      %1130 = vmatpush.bf16.msra.mxu0 0
      %1131 = vmatpush.bf16.msra.mxu0 0
      %1132 = vmatpush.bf16.msra.mxu0 0
      %1133 = vmatpush.bf16.msra.mxu0 %v1111
      %1134 = vmatmul.bf16.gmra.mxu0 %v1105
      %v1135 = vpop.f32.mrf.mxu0
      %v1136 = vadd.f32 0.0, %v1135
      %v1137 = vpop.f32.mrf.mxu0
      %1138 = vdwg.mxu0
      %s1139 = scalar_lea.vmem %s6, 4
      %v1140 = vld [vmem:[%s1139] sm:$0x3]
      %v1142 = vperm.slane %v1140, 0
      %v1143 = vperm.slane %v1140, 1
      %v1146 = vmul.f32 %v1123, %v1142
      %v1147 = vmul.f32 %v1136, %v1143
      %v1148 = vadd.f32 %v1091, %v1146
      %v1149 = vadd.f32 %v1092, %v1147
      %1150 = vrot.lane.b32.xlu0 %v489, 1
      %v1151 = vpop.permute.xlu0 %1150
      %1152 = vrot.lane.b32.xlu0 %v490, 1
      %v1153 = vpop.permute.xlu0 %1152
      %vm1154 = vcmp.lt.s32.totalorder %v951, 1
      %v1155 = vsel %vm1154, %v1151, %v1153
      %v1156 = vsel %vm1154, %v1153, %v1151
      %s1157 = scalar_lea.vmem %s7, 12
      %v1158 = vld [vmem:[%s1157] sm:$0xf]
      %v1159 = vpack.c.bf16 %v1156, %v1156
      %v1160 = vpack.c.bf16 %v1155, %v1155
      %v1162 = vsel %vm405, %v1158, 0
      %v1165 = vsel %vm409, %v1159, 0
      %v1168 = vsel %vm409, %v1160, 0
      %1170 = vmatpush.bf16.msra.mxu0 0
      %1171 = vmatpush.bf16.msra.mxu0 0
      %1172 = vmatpush.bf16.msra.mxu0 0
      %1173 = vmatpush.bf16.msra.mxu0 0
      %1174 = vmatpush.bf16.msra.mxu0 0
      %1175 = vmatpush.bf16.msra.mxu0 0
      %1176 = vmatpush.bf16.msra.mxu0 0
      %1177 = vmatpush.bf16.msra.mxu0 %v1165
      %1178 = vmatmul.bf16.gmra.mxu0 %v1162
      %v1179 = vpop.f32.mrf.mxu0
      %v1180 = vadd.f32 0.0, %v1179
      %v1181 = vpop.f32.mrf.mxu0
      %1182 = vdwg.mxu0
      %1183 = vmatpush.bf16.msra.mxu0 0
      %1184 = vmatpush.bf16.msra.mxu0 0
      %1185 = vmatpush.bf16.msra.mxu0 0
      %1186 = vmatpush.bf16.msra.mxu0 0
      %1187 = vmatpush.bf16.msra.mxu0 0
      %1188 = vmatpush.bf16.msra.mxu0 0
      %1189 = vmatpush.bf16.msra.mxu0 0
      %1190 = vmatpush.bf16.msra.mxu0 %v1168
      %1191 = vmatmul.bf16.gmra.mxu0 %v1162
      %v1192 = vpop.f32.mrf.mxu0
      %v1193 = vadd.f32 0.0, %v1192
      %v1194 = vpop.f32.mrf.mxu0
      %1195 = vdwg.mxu0
      %s1196 = scalar_lea.vmem %s6, 6
      %v1197 = vld [vmem:[%s1196] sm:$0x3]
      %v1199 = vperm.slane %v1197, 0
      %v1200 = vperm.slane %v1197, 1
      %v1203 = vmul.f32 %v1180, %v1199
      %v1204 = vmul.f32 %v1193, %v1200
      %v1205 = vadd.f32 %v1148, %v1203
      %v1206 = vadd.f32 %v1149, %v1204
      %1207 = vrot.lane.b32.xlu0 %v489, 127
      %v1208 = vpop.permute.xlu0 %1207
      %1209 = vrot.lane.b32.xlu0 %v490, 127
      %v1210 = vpop.permute.xlu0 %1209
      %vm1211 = vcmp.lt.s32.totalorder %v951, 127
      %v1212 = vsel %vm1211, %v1208, %v1210
      %v1213 = vsel %vm1211, %v1210, %v1208
      %s1214 = scalar_lea.vmem %s7, 20
      %v1215 = vld [vmem:[%s1214] sm:$0xf]
      %v1216 = vpack.c.bf16 %v1212, %v1212
      %v1217 = vpack.c.bf16 %v1213, %v1213
      %v1219 = vsel %vm405, %v1215, 0
      %v1222 = vsel %vm409, %v1216, 0
      %v1225 = vsel %vm409, %v1217, 0
      %1227 = vmatpush.bf16.msra.mxu0 0
      %1228 = vmatpush.bf16.msra.mxu0 0
      %1229 = vmatpush.bf16.msra.mxu0 0
      %1230 = vmatpush.bf16.msra.mxu0 0
      %1231 = vmatpush.bf16.msra.mxu0 0
      %1232 = vmatpush.bf16.msra.mxu0 0
      %1233 = vmatpush.bf16.msra.mxu0 0
      %1234 = vmatpush.bf16.msra.mxu0 %v1222
      %1235 = vmatmul.bf16.gmra.mxu0 %v1219
      %v1236 = vpop.f32.mrf.mxu0
      %v1237 = vadd.f32 0.0, %v1236
      %v1238 = vpop.f32.mrf.mxu0
      %1239 = vdwg.mxu0
      %1240 = vmatpush.bf16.msra.mxu0 0
      %1241 = vmatpush.bf16.msra.mxu0 0
      %1242 = vmatpush.bf16.msra.mxu0 0
      %1243 = vmatpush.bf16.msra.mxu0 0
      %1244 = vmatpush.bf16.msra.mxu0 0
      %1245 = vmatpush.bf16.msra.mxu0 0
      %1246 = vmatpush.bf16.msra.mxu0 0
      %1247 = vmatpush.bf16.msra.mxu0 %v1225
      %1248 = vmatmul.bf16.gmra.mxu0 %v1219
      %v1249 = vpop.f32.mrf.mxu0
      %v1250 = vadd.f32 0.0, %v1249
      %v1251 = vpop.f32.mrf.mxu0
      %1252 = vdwg.mxu0
      %s1253 = scalar_lea.vmem %s6, 10
      %v1254 = vld [vmem:[%s1253] sm:$0x3]
      %v1256 = vperm.slane %v1254, 0
      %v1257 = vperm.slane %v1254, 1
      %v1260 = vmul.f32 %v1237, %v1256
      %v1261 = vmul.f32 %v1250, %v1257
      %v1262 = vadd.f32 %v1205, %v1260
      %v1263 = vadd.f32 %v1206, %v1261
      %1264 = vrot.lane.b32.xlu0 %v489, 113
      %v1265 = vpop.permute.xlu0 %1264
      %1266 = vrot.lane.b32.xlu0 %v490, 113
      %v1267 = vpop.permute.xlu0 %1266
      %vm1268 = vcmp.lt.s32.totalorder %v951, 113
      %v1269 = vsel %vm1268, %v1265, %v1267
      %v1270 = vsel %vm1268, %v1267, %v1265
      %s1271 = scalar_lea.vmem %s7, 24
      %v1272 = vld [vmem:[%s1271] sm:$0xf]
      %v1273 = vpack.c.bf16 %v1269, %v1269
      %v1274 = vpack.c.bf16 %v1270, %v1270
      %v1276 = vsel %vm405, %v1272, 0
      %v1279 = vsel %vm409, %v1273, 0
      %v1282 = vsel %vm409, %v1274, 0
      %1284 = vmatpush.bf16.msra.mxu0 0
      %1285 = vmatpush.bf16.msra.mxu0 0
      %1286 = vmatpush.bf16.msra.mxu0 0
      %1287 = vmatpush.bf16.msra.mxu0 0
      %1288 = vmatpush.bf16.msra.mxu0 0
      %1289 = vmatpush.bf16.msra.mxu0 0
      %1290 = vmatpush.bf16.msra.mxu0 0
      %1291 = vmatpush.bf16.msra.mxu0 %v1279
      %1292 = vmatmul.bf16.gmra.mxu0 %v1276
      %v1293 = vpop.f32.mrf.mxu0
      %v1294 = vadd.f32 0.0, %v1293
      %v1295 = vpop.f32.mrf.mxu0
      %1296 = vdwg.mxu0
      %1297 = vmatpush.bf16.msra.mxu0 0
      %1298 = vmatpush.bf16.msra.mxu0 0
      %1299 = vmatpush.bf16.msra.mxu0 0
      %1300 = vmatpush.bf16.msra.mxu0 0
      %1301 = vmatpush.bf16.msra.mxu0 0
      %1302 = vmatpush.bf16.msra.mxu0 0
      %1303 = vmatpush.bf16.msra.mxu0 0
      %1304 = vmatpush.bf16.msra.mxu0 %v1282
      %1305 = vmatmul.bf16.gmra.mxu0 %v1276
      %v1306 = vpop.f32.mrf.mxu0
      %v1307 = vadd.f32 0.0, %v1306
      %v1308 = vpop.f32.mrf.mxu0
      %1309 = vdwg.mxu0
      %s1310 = scalar_lea.vmem %s6, 12
      %v1311 = vld [vmem:[%s1310] sm:$0x3]
      %v1313 = vperm.slane %v1311, 0
      %v1314 = vperm.slane %v1311, 1
      %v1317 = vmul.f32 %v1294, %v1313
      %v1318 = vmul.f32 %v1307, %v1314
      %v1319 = vadd.f32 %v1262, %v1317
      %v1320 = vadd.f32 %v1263, %v1318
      %1321 = vrot.lane.b32.xlu0 %v489, 112
      %v1322 = vpop.permute.xlu0 %1321
      %1323 = vrot.lane.b32.xlu0 %v490, 112
      %v1324 = vpop.permute.xlu0 %1323
      %vm1325 = vcmp.lt.s32.totalorder %v951, 112
      %v1326 = vsel %vm1325, %v1322, %v1324
      %v1327 = vsel %vm1325, %v1324, %v1322
      %s1328 = scalar_lea.vmem %s7, 28
      %v1329 = vld [vmem:[%s1328] sm:$0xf]
      %v1330 = vpack.c.bf16 %v1326, %v1326
      %v1331 = vpack.c.bf16 %v1327, %v1327
      %v1333 = vsel %vm405, %v1329, 0
      %v1336 = vsel %vm409, %v1330, 0
      %v1339 = vsel %vm409, %v1331, 0
      %1341 = vmatpush.bf16.msra.mxu0 0
      %1342 = vmatpush.bf16.msra.mxu0 0
      %1343 = vmatpush.bf16.msra.mxu0 0
      %1344 = vmatpush.bf16.msra.mxu0 0
      %1345 = vmatpush.bf16.msra.mxu0 0
      %1346 = vmatpush.bf16.msra.mxu0 0
      %1347 = vmatpush.bf16.msra.mxu0 0
      %1348 = vmatpush.bf16.msra.mxu0 %v1336
      %1349 = vmatmul.bf16.gmra.mxu0 %v1333
      %v1350 = vpop.f32.mrf.mxu0
      %v1351 = vadd.f32 0.0, %v1350
      %v1352 = vpop.f32.mrf.mxu0
      %1353 = vdwg.mxu0
      %1354 = vmatpush.bf16.msra.mxu0 0
      %1355 = vmatpush.bf16.msra.mxu0 0
      %1356 = vmatpush.bf16.msra.mxu0 0
      %1357 = vmatpush.bf16.msra.mxu0 0
      %1358 = vmatpush.bf16.msra.mxu0 0
      %1359 = vmatpush.bf16.msra.mxu0 0
      %1360 = vmatpush.bf16.msra.mxu0 0
      %1361 = vmatpush.bf16.msra.mxu0 %v1339
      %1362 = vmatmul.bf16.gmra.mxu0 %v1333
      %v1363 = vpop.f32.mrf.mxu0
      %v1364 = vadd.f32 0.0, %v1363
      %v1365 = vpop.f32.mrf.mxu0
      %1366 = vdwg.mxu0
      %s1367 = scalar_lea.vmem %s6, 14
      %v1368 = vld [vmem:[%s1367] sm:$0x3]
      %v1370 = vperm.slane %v1368, 0
      %v1371 = vperm.slane %v1368, 1
      %v1374 = vmul.f32 %v1351, %v1370
      %v1375 = vmul.f32 %v1364, %v1371
      %v1376 = vadd.f32 %v1319, %v1374
      %v1377 = vadd.f32 %v1320, %v1375
      %1378 = vrot.lane.b32.xlu0 %v489, 111
      %v1379 = vpop.permute.xlu0 %1378
      %1380 = vrot.lane.b32.xlu0 %v490, 111
      %v1381 = vpop.permute.xlu0 %1380
      %vm1382 = vcmp.lt.s32.totalorder %v951, 111
      %v1383 = vsel %vm1382, %v1379, %v1381
      %v1384 = vsel %vm1382, %v1381, %v1379
      %s1385 = scalar_lea.vmem %s7, 32
      %v1386 = vld [vmem:[%s1385] sm:$0xf]
      %v1387 = vpack.c.bf16 %v1383, %v1383
      %v1388 = vpack.c.bf16 %v1384, %v1384
      %v1390 = vsel %vm405, %v1386, 0
      %v1393 = vsel %vm409, %v1387, 0
      %v1396 = vsel %vm409, %v1388, 0
      %1398 = vmatpush.bf16.msra.mxu0 0
      %1399 = vmatpush.bf16.msra.mxu0 0
      %1400 = vmatpush.bf16.msra.mxu0 0
      %1401 = vmatpush.bf16.msra.mxu0 0
      %1402 = vmatpush.bf16.msra.mxu0 0
      %1403 = vmatpush.bf16.msra.mxu0 0
      %1404 = vmatpush.bf16.msra.mxu0 0
      %1405 = vmatpush.bf16.msra.mxu0 %v1393
      %1406 = vmatmul.bf16.gmra.mxu0 %v1390
      %v1407 = vpop.f32.mrf.mxu0
      %v1408 = vadd.f32 0.0, %v1407
      %v1409 = vpop.f32.mrf.mxu0
      %1410 = vdwg.mxu0
      %1411 = vmatpush.bf16.msra.mxu0 0
      %1412 = vmatpush.bf16.msra.mxu0 0
      %1413 = vmatpush.bf16.msra.mxu0 0
      %1414 = vmatpush.bf16.msra.mxu0 0
      %1415 = vmatpush.bf16.msra.mxu0 0
      %1416 = vmatpush.bf16.msra.mxu0 0
      %1417 = vmatpush.bf16.msra.mxu0 0
      %1418 = vmatpush.bf16.msra.mxu0 %v1396
      %1419 = vmatmul.bf16.gmra.mxu0 %v1390
      %v1420 = vpop.f32.mrf.mxu0
      %v1421 = vadd.f32 0.0, %v1420
      %v1422 = vpop.f32.mrf.mxu0
      %1423 = vdwg.mxu0
      %s1424 = scalar_lea.vmem %s6, 16
      %v1425 = vld [vmem:[%s1424] sm:$0x3]
      %v1427 = vperm.slane %v1425, 0
      %v1428 = vperm.slane %v1425, 1
      %v1431 = vmul.f32 %v1408, %v1427
      %v1432 = vmul.f32 %v1421, %v1428
      %v1433 = vadd.f32 %v1376, %v1431
      %v1434 = vadd.f32 %v1377, %v1432
      %1435 = vset.pattern.permute.xlu0 2
      %1436 = vperm.xlu0 %1435, %v391
      %v1437 = vpop.permute.xlu0 %1436
      %v1439 = vadd.f32 %v1433, %v1437
      %v1440 = vadd.f32 %v1434, %v1437
      %v1441 = vxor.u32 %v1439, 2147483648
      %v1442 = vxor.u32 %v1440, 2147483648
      %v1443 = vmul.f32 %v1441, 1.442695
      %v1444 = vpow.pop %v1443
      %v1445 = vmul.f32 %v1442, 1.442695
      %v1446 = vpow.pop %v1445
      %v1447 = vadd.f32 %v1444, 1.0
      %v1448 = vadd.f32 %v1446, 1.0
      %v1449 = vrcp.pop %v1447
      %v1450 = vmul.f32 %v1447, %v1449
      %v1451 = vsub.f32 1.0, %v1450
      %v1452 = vmul.f32 %v1449, %v1451
      %v1453 = vadd.f32 %v1449, %v1452
      %vm1454 = vweird.f32 %v1447
      %vm1455 = vweird.f32 %v1449
      %vm1456 = vmor %vm1454, %vm1455
      %v1457 = vsel %vm1456, %v1449, %v1453
      %v1458 = vand.u32 2147483647, %v1447
      %vm1459 = vcmp.eq.f32.partialorder %v1458, 8.507059e+37
      %v1460 = vand.u32 %v1447, 2147483648
      %v1461 = vor.u32 1.1754944e-38, %v1460
      %v1462 = vsel %vm1459, %v1461, %v1457
      %v1463 = vmul.f32 1.0, %v1462
      %v1464 = vrcp.pop %v1448
      %v1465 = vmul.f32 %v1448, %v1464
      %v1466 = vsub.f32 1.0, %v1465
      %v1467 = vmul.f32 %v1464, %v1466
      %v1468 = vadd.f32 %v1464, %v1467
      %vm1469 = vweird.f32 %v1448
      %vm1470 = vweird.f32 %v1464
      %vm1471 = vmor %vm1469, %vm1470
      %v1472 = vsel %vm1471, %v1464, %v1468
      %v1473 = vand.u32 2147483647, %v1448
      %vm1474 = vcmp.eq.f32.partialorder %v1473, 8.507059e+37
      %v1475 = vand.u32 %v1448, 2147483648
      %v1476 = vor.u32 1.1754944e-38, %v1475
      %v1477 = vsel %vm1474, %v1476, %v1472
      %v1478 = vmul.f32 1.0, %v1477
      %v1479 = vmul.f32 %v1439, %v1463
      %v1480 = vmul.f32 %v1440, %v1478
      %v1481 = vadd.f32 %v1479, %v1480
      %1482 = vadd.xlane.f32.xlu0 %v1481
      %v1483 = vpop.xlane.xlu0 %1482
      %v1484 = vrcp.pop 256.0
      %v1485 = vmul.f32 256.0, %v1484
      %v1486 = vsub.f32 1.0, %v1485
      %v1487 = vmul.f32 %v1484, %v1486
      %v1488 = vadd.f32 %v1484, %v1487
      %vm1489 = vweird.f32 %v1484
      %v1490 = vsel %vm1489, %v1484, %v1488
      %v1491 = vmul.f32 %v1483, %v1490
      %v1492 = vadd.f32 %v1491, %v391
      %vm1493 = vcmask 48168
      %v1494 = vsel %vm1493, %v1492, -inf
      %v1495 = vrot.slane %v1494, 4
      %v1496 = vmax.f32 %v1494, %v1495
      %v1497 = vrot.slane %v1496, 2
      %v1498 = vmax.f32 %v1496, %v1497
      %v1499 = vrot.slane %v1498, 1
      %v1500 = vmax.f32 %v1498, %v1499
      %v1501 = vsub.f32 %v1492, %v1500
      %v1502 = vmul.f32 %v1501, 1.442695
      %v1503 = vpow.pop %v1502
      %v1504 = vsel %vm1493, %v1503, 0.0
      %v1505 = vrot.slane %v1504, 4
      %v1506 = vadd.f32 %v1504, %v1505
      %v1507 = vrot.slane %v1506, 2
      %v1508 = vadd.f32 %v1506, %v1507
      %v1509 = vrot.slane %v1508, 1
      %v1510 = vadd.f32 %v1508, %v1509
      %v1511 = vrcp.pop %v1510
      %v1512 = vmul.f32 %v1510, %v1511
      %v1513 = vsub.f32 1.0, %v1512
      %v1514 = vmul.f32 %v1511, %v1513
      %v1515 = vadd.f32 %v1511, %v1514
      %vm1516 = vweird.f32 %v1510
      %vm1517 = vweird.f32 %v1511
      %vm1518 = vmor %vm1516, %vm1517
      %v1519 = vsel %vm1518, %v1511, %v1515
      %v1520 = vand.u32 2147483647, %v1510
      %vm1521 = vcmp.eq.f32.partialorder %v1520, 8.507059e+37
      %v1522 = vand.u32 %v1510, 2147483648
      %v1523 = vor.u32 1.1754944e-38, %v1522
      %v1524 = vsel %vm1521, %v1523, %v1519
      %v1525 = vmul.f32 %v1503, %v1524
      %v1526 = vadd.f32 %v489, %v490
      %1527 = vadd.xlane.f32.xlu0 %v1526
      %v1528 = vpop.xlane.xlu0 %1527
      %v1529 = vmul.f32 %v1528, %v1490
      %v1530 = vmul.f32 %v391, %v1529
      %1531 = vrot.lane.b32.xlu0 %v391, 127
      %v1532 = vpop.permute.xlu0 %1531
      %v1534 = vadd.f32 %v1530, %v1532
      %1535 = vrot.lane.b32.xlu0 %v391, 126
      %v1536 = vpop.permute.xlu0 %1535
      %v1538 = vadd.f32 %v1534, %v1536
      %vm1539 = vcmask 31768
      %v1540 = vsel %vm1539, %v1538, -inf
      %v1541 = vrot.slane %v1540, 4
      %v1542 = vmax.f32 %v1540, %v1541
      %v1543 = vrot.slane %v1542, 2
      %v1544 = vmax.f32 %v1542, %v1543
      %v1545 = vrot.slane %v1544, 1
      %v1546 = vmax.f32 %v1544, %v1545
      %v1547 = vsub.f32 %v1538, %v1546
      %v1548 = vmul.f32 %v1547, 1.442695
      %v1549 = vpow.pop %v1548
      %v1550 = vsel %vm1539, %v1549, 0.0
      %v1551 = vrot.slane %v1550, 4
      %v1552 = vadd.f32 %v1550, %v1551
      %v1553 = vrot.slane %v1552, 2
      %v1554 = vadd.f32 %v1552, %v1553
      %v1555 = vrot.slane %v1554, 1
      %v1556 = vadd.f32 %v1554, %v1555
      %v1557 = vrcp.pop %v1556
      %v1558 = vmul.f32 %v1556, %v1557
      %v1559 = vsub.f32 1.0, %v1558
      %v1560 = vmul.f32 %v1557, %v1559
      %v1561 = vadd.f32 %v1557, %v1560
      %vm1562 = vweird.f32 %v1556
      %vm1563 = vweird.f32 %v1557
      %vm1564 = vmor %vm1562, %vm1563
      %v1565 = vsel %vm1564, %v1557, %v1561
      %v1566 = vand.u32 2147483647, %v1556
      %vm1567 = vcmp.eq.f32.partialorder %v1566, 8.507059e+37
      %v1568 = vand.u32 %v1556, 2147483648
      %v1569 = vor.u32 1.1754944e-38, %v1568
      %v1570 = vsel %vm1567, %v1569, %v1565
      %v1571 = vmul.f32 %v1549, %v1570
      %1572 = vset.pattern.permute.xlu0 3
      %1573 = vperm.xlu0 %1572, %v391
      %v1574 = vpop.permute.xlu0 %1573
      %v1576 = vmul.f32 %v1574, %v940
      %v1577 = vmul.f32 %v1574, %v941
      %1578 = vset.pattern.permute.xlu0 4
      %1579 = vperm.xlu0 %1578, %v391
      %v1580 = vpop.permute.xlu0 %1579
      %v1582 = vadd.f32 %v1576, %v1580
      %v1583 = vadd.f32 %v1577, %v1580
      %1585 = vset.pattern.permute.xlu0 3
      %1586 = vperm.xlu0 %1585, %v1571
      %v1587 = vpop.permute.xlu0 %1586
      %v1589 = vmul.f32 %v1479, %v1587
      %v1590 = vmul.f32 %v1480, %v1587
      %1592 = vset.pattern.permute.xlu0 5
      %1593 = vperm.xlu0 %1592, %v1525
      %v1594 = vpop.permute.xlu0 %1593
      %v1596 = vmul.f32 %v1582, %v1594
      %v1597 = vmul.f32 %v1583, %v1594
      %v1598 = vadd.f32 %v1589, %v1596
      %v1599 = vadd.f32 %v1590, %v1597
      %v1600 = vxor.u32 %v1598, 2147483648
      %v1601 = vxor.u32 %v1599, 2147483648
      %v1602 = vmul.f32 %v1600, 1.442695
      %v1603 = vpow.pop %v1602
      %v1604 = vmul.f32 %v1601, 1.442695
      %v1605 = vpow.pop %v1604
      %v1606 = vadd.f32 %v1603, 1.0
      %v1607 = vadd.f32 %v1605, 1.0
      %v1608 = vrcp.pop %v1606
      %v1609 = vmul.f32 %v1606, %v1608
      %v1610 = vsub.f32 1.0, %v1609
      %v1611 = vmul.f32 %v1608, %v1610
      %v1612 = vadd.f32 %v1608, %v1611
      %vm1613 = vweird.f32 %v1606
      %vm1614 = vweird.f32 %v1608
      %vm1615 = vmor %vm1613, %vm1614
      %v1616 = vsel %vm1615, %v1608, %v1612
      %v1617 = vand.u32 2147483647, %v1606
      %vm1618 = vcmp.eq.f32.partialorder %v1617, 8.507059e+37
      %v1619 = vand.u32 %v1606, 2147483648
      %v1620 = vor.u32 1.1754944e-38, %v1619
      %v1621 = vsel %vm1618, %v1620, %v1616
      %v1622 = vmul.f32 1.0, %v1621
      %v1623 = vrcp.pop %v1607
      %v1624 = vmul.f32 %v1607, %v1623
      %v1625 = vsub.f32 1.0, %v1624
      %v1626 = vmul.f32 %v1623, %v1625
      %v1627 = vadd.f32 %v1623, %v1626
      %vm1628 = vweird.f32 %v1607
      %vm1629 = vweird.f32 %v1623
      %vm1630 = vmor %vm1628, %vm1629
      %v1631 = vsel %vm1630, %v1623, %v1627
      %v1632 = vand.u32 2147483647, %v1607
      %vm1633 = vcmp.eq.f32.partialorder %v1632, 8.507059e+37
      %v1634 = vand.u32 %v1607, 2147483648
      %v1635 = vor.u32 1.1754944e-38, %v1634
      %v1636 = vsel %vm1633, %v1635, %v1631
      %v1637 = vmul.f32 1.0, %v1636
      %v1638 = vld [vmem:[%s9] sm:$0xf]
      %v1639 = vmul.f32 %v1622, %v489
      %v1640 = vmul.f32 %v1637, %v490
      %v1641 = vpack.c.bf16 %v1639, %v1639
      %v1642 = vpack.c.bf16 %v1640, %v1640
      %v1643 = vld [vmem:[%s10] sm:$0xff]
      %1645 = vset.pattern.permute.xlu0 0
      %1646 = vperm.xlu0 %1645, %v1643
      %v1647 = vpop.permute.xlu0 %1646
      %v1650 = vsel %vm405, %v1638, 0
      %v1653 = vsel %vm409, %v1641, 0
      %v1656 = vsel %vm409, %v1642, 0
      %1658 = vmatpush.bf16.msra.mxu0 0
      %1659 = vmatpush.bf16.msra.mxu0 0
      %1660 = vmatpush.bf16.msra.mxu0 0
      %1661 = vmatpush.bf16.msra.mxu0 0
      %1662 = vmatpush.bf16.msra.mxu0 0
      %1663 = vmatpush.bf16.msra.mxu0 0
      %1664 = vmatpush.bf16.msra.mxu0 0
      %1665 = vmatpush.bf16.msra.mxu0 %v1653
      %1666 = vmatmul.bf16.gmra.mxu0 %v1650
      %v1667 = vpop.f32.mrf.mxu0
      %v1668 = vadd.f32 %v1647, %v1667
      %v1669 = vpop.f32.mrf.mxu0
      %1670 = vdwg.mxu0
      %1671 = vmatpush.bf16.msra.mxu0 0
      %1672 = vmatpush.bf16.msra.mxu0 0
      %1673 = vmatpush.bf16.msra.mxu0 0
      %1674 = vmatpush.bf16.msra.mxu0 0
      %1675 = vmatpush.bf16.msra.mxu0 0
      %1676 = vmatpush.bf16.msra.mxu0 0
      %1677 = vmatpush.bf16.msra.mxu0 0
      %1678 = vmatpush.bf16.msra.mxu0 %v1656
      %1679 = vmatmul.bf16.gmra.mxu0 %v1650
      %v1680 = vpop.f32.mrf.mxu0
      %v1681 = vadd.f32 %v1647, %v1680
      %v1682 = vpop.f32.mrf.mxu0
      %1683 = vdwg.mxu0
      %v1684 = vxor.u32 %v1668, 2147483648
      %v1685 = vxor.u32 %v1681, 2147483648
      %v1686 = vmul.f32 %v1684, 1.442695
      %v1687 = vpow.pop %v1686
      %v1688 = vmul.f32 %v1685, 1.442695
      %v1689 = vpow.pop %v1688
      %v1690 = vadd.f32 %v1687, 1.0
      %v1691 = vadd.f32 %v1689, 1.0
      %v1692 = vrcp.pop %v1690
      %v1693 = vmul.f32 %v1690, %v1692
      %v1694 = vsub.f32 1.0, %v1693
      %v1695 = vmul.f32 %v1692, %v1694
      %v1696 = vadd.f32 %v1692, %v1695
      %vm1697 = vweird.f32 %v1690
      %vm1698 = vweird.f32 %v1692
      %vm1699 = vmor %vm1697, %vm1698
      %v1700 = vsel %vm1699, %v1692, %v1696
      %v1701 = vand.u32 2147483647, %v1690
      %vm1702 = vcmp.eq.f32.partialorder %v1701, 8.507059e+37
      %v1703 = vand.u32 %v1690, 2147483648
      %v1704 = vor.u32 1.1754944e-38, %v1703
      %v1705 = vsel %vm1702, %v1704, %v1700
      %v1706 = vmul.f32 1.0, %v1705
      %v1707 = vrcp.pop %v1691
      %v1708 = vmul.f32 %v1691, %v1707
      %v1709 = vsub.f32 1.0, %v1708
      %v1710 = vmul.f32 %v1707, %v1709
      %v1711 = vadd.f32 %v1707, %v1710
      %vm1712 = vweird.f32 %v1691
      %vm1713 = vweird.f32 %v1707
      %vm1714 = vmor %vm1712, %vm1713
      %v1715 = vsel %vm1714, %v1707, %v1711
      %v1716 = vand.u32 2147483647, %v1691
      %vm1717 = vcmp.eq.f32.partialorder %v1716, 8.507059e+37
      %v1718 = vand.u32 %v1691, 2147483648
      %v1719 = vor.u32 1.1754944e-38, %v1718
      %v1720 = vsel %vm1717, %v1719, %v1715
      %v1721 = vmul.f32 1.0, %v1720
      %v1722 = vmul.f32 %v1668, %v1706
      %v1723 = vmul.f32 %v1681, %v1721
      %1724 = vst [vmem:[%s388] sm:$0xff] %v1722
      %1725 = vst [vmem:[%s388 + $0x8] sm:$0xff] %v1723
      %s1726 = smul.u32 2, %s22
      %p1727 = scmp.lt.s32.totalorder %s1726, 3
      %s1728 = scalar_select %p1727, %s1726, 3
      %s1729 = smul.addr %s1728, 8
      %s1730 = scalar_lea.vmem %s11, %s1729
      // Predicated region
      $region65: #{_ema_att_forward.1} parent=63 // pred_check
        %p1731 = pneg %p276
      $region66: #{_ema_att_forward.1} parent=63 // pred_check_branch
        %1733 = sbr.rel (%p1731) target = $region68
      $region67: #{_ema_att_forward.1} parent=63 // pred_region
        %s1734 = smul.u32 2, %s22
      $region68: #{_ema_att_forward.1} parent=63 // pred_fallthru
        _
    $region64: #{_ema_att_forward.1} parent=5 // pred_fallthru
      _
    %p1735 = scmp.le.s32.totalorder 2, %s17
    // Predicated region
    $region69: #{_ema_att_forward.1} parent=5 // pred_check
      %p1736 = pneg %p1735
    $region70: #{_ema_att_forward.1} parent=5 // pred_check_branch
      %1738 = sbr.rel (%p1736) target = $region72
    $region71: #{_ema_att_forward.1} parent=5 // pred_region
      %s1739 = ssub.s32 %s17, 2
      // Predicated region
      $region73: #{_ema_att_forward.1} parent=71 // pred_check
        %p1740 = pneg %p282
      $region74: #{_ema_att_forward.1} parent=71 // pred_check_branch
        %1742 = sbr.rel (%p1740) target = $region76
      $region75: #{_ema_att_forward.1} parent=71 // pred_region
        %s1743 = smul.u32 2, %s23
        %p1744 = scmp.lt.s32.totalorder %s1743, 3
        %s1745 = scalar_select %p1744, %s1743, 3
        %s1746 = smul.addr %s1745, 8
        %s1747 = scalar_lea.vmem %s11, %s1746
      $region76: #{_ema_att_forward.1} parent=71 // pred_fallthru
        _
    $region72: #{_ema_att_forward.1} parent=5 // pred_fallthru
      _
  $region6: #{_ema_att_forward.1} parent=0 // loop_footer
    %s21 = sadd.s32 1, %s17
  $region7: #{_ema_att_forward.1} parent=0 // loop_footer_branch
    %16 = sbr.rel target = $region3
  $region8: #{_ema_att_forward.1} parent=0 // loop_exit
    _

</llo_original>
